<compile_context>
chip_gen: v7x
topology: tpu7x:2x2x1
jax: 0.10.0
libtpu: 0.0.40
codegen_flags: <defaults>
</compile_context>

<pallas_src>
import jax
import jax.numpy as jnp
from jax import lax
from jax.experimental import pallas as pl
from jax.experimental.pallas import tpu as pltpu

# ----------------------------- model config (small) -----------------------------
B = 2            # batch
S = 8            # sequence length
HID = 32         # hidden size
NH = 4           # attention heads
DH = HID // NH   # head dim
FFN = 64         # intermediate size
LAYERS = 2
VOCAB = 50
MAX_POS = 16
TYPE_VOCAB = 2
LN_EPS = 1e-12
ATTN_SCALE = 1.0 / (DH ** 0.5)
M = B * S        # tokens per forward

# TODO(synk): at real BERT shapes (HID=768, FFN=3072, B*S in the thousands) the
# whole-array single-block specs below must become a tiled (m, n, k) grid:
# tm=128-256, 256-multiple N/K tiles (128 on v5e), f32 accumulator scratch,
# reduction axis last + "arbitrary", token axis "parallel" (2 TCs on v7x), and
# an explicit vmem_limit_bytes sized for v7x's 64 MiB VMEM.  HID=768 also makes
# the output lane-dense automatically (here HID=32<128 -> masked stores remain).


# ----------------------------- in-kernel helpers ---------------------------------
def _layernorm(x, gamma, beta):
    mu = jnp.mean(x, axis=-1, keepdims=True)
    var = jnp.mean((x - mu) ** 2, axis=-1, keepdims=True)
    return (x - mu) * lax.rsqrt(var + LN_EPS) * gamma + beta


def _gelu(x):
    # TODO(synk): BERT uses exact erf-GELU; tanh approximation kept because erf
    # has no guaranteed Mosaic lowering.  Small systematic deviation.
    return 0.5 * x * (1.0 + jnp.tanh(0.7978845608028654 * (x + 0.044715 * x * x * x)))


# ----------------------------- fused encoder kernel ------------------------------
def _bert_encoder_kernel(
    h_in_ref, mask_ref, emb_g_ref, emb_b_ref,
    qkv_w_ref, qkv_b_ref, o_w_ref, o_b_ref, ln1_g_ref, ln1_b_ref,
    i_w_ref, i_b_ref, f_w_ref, f_b_ref, ln2_g_ref, ln2_b_ref,
    out_ref, h_scr,
):
    l = pl.program_id(0)

    # ---- layer 0: fold the embedding LayerNorm into the carry init -------------
    @pl.when(l == 0)
    def _():
        h_scr[...] = _layernorm(h_in_ref[...], emb_g_ref[...], emb_b_ref[...])

    h = h_scr[...]                                   # [M, HID] f32 carry
    hb = h.astype(jnp.bfloat16)

    # ---- fused QKV projection: one lane-dense matmul (N = 3*HID) ----------------
    qkv = jnp.dot(hb, qkv_w_ref[...],
                  preferred_element_type=jnp.float32) + qkv_b_ref[...]   # [M, 3H] f32
    qkv16 = qkv.astype(jnp.bfloat16)
    mask2d = mask_ref[...]                           # [M, M] block-diag additive mask

    # ---- multi-head self-attention, all on values (no scratch round-trip) -------
    # Batch dim is folded into the M rows; cross-batch pairs are killed by the
    # -1e4 block-diagonal mask (exp underflows to exactly 0 in f32), so per head
    # we do a single [M,DH]x[DH,M] score matmul and one [M,M]x[M,DH] context
    # matmul instead of per-(batch,head) 8x8 dots.
    ctx_parts = []
    for hd in range(NH):
        c0 = hd * DH
        qh = qkv16[:, c0:c0 + DH]                        # [M, DH]
        kh = qkv16[:, HID + c0:HID + c0 + DH]            # [M, DH]
        vh = qkv16[:, 2 * HID + c0:2 * HID + c0 + DH]    # [M, DH]
        # q.k^T via dot_general (contract last dims) -- no explicit transpose.
        s = lax.dot_general(qh, kh, (((1,), (1,)), ((), ())),
                            preferred_element_type=jnp.float32)          # [M, M]
        s = s * ATTN_SCALE + mask2d
        s = s - jnp.max(s, axis=-1, keepdims=True)
        p = jnp.exp(s)
        p = p / jnp.sum(p, axis=-1, keepdims=True)       # exact divide (f32)
        ctx_parts.append(jnp.dot(p.astype(jnp.bfloat16), vh,
                                 preferred_element_type=jnp.float32))    # [M, DH]
    ctx = jnp.concatenate(ctx_parts, axis=-1)            # [M, HID] f32 (value)

    # ---- output projection + residual + LayerNorm --------------------------------
    attn_out = jnp.dot(ctx.astype(jnp.bfloat16), o_w_ref[...],
                       preferred_element_type=jnp.float32) + o_b_ref[...]
    h1 = _layernorm(attn_out + h, ln1_g_ref[...], ln1_b_ref[...])

    # ---- FFN (GELU) + residual + LayerNorm ----------------------------------------
    inter = _gelu(jnp.dot(h1.astype(jnp.bfloat16), i_w_ref[...],
                          preferred_element_type=jnp.float32) + i_b_ref[...])
    ffn_out = jnp.dot(inter.astype(jnp.bfloat16), f_w_ref[...],
                      preferred_element_type=jnp.float32) + f_b_ref[...]
    h_new = _layernorm(ffn_out + h1, ln2_g_ref[...], ln2_b_ref[...])

    # carry for the next layer; emit only on the final layer
    h_scr[...] = h_new

    @pl.when(l == pl.num_programs(0) - 1)
    def _():
        out_ref[...] = h_new


# ----------------------------- kernel wrapper -------------------------------------
def bert_encoder(h_emb, mask2d, params):
    """Full encoder stack in one pallas_call: [M, HID] -> [M, HID]."""

    def const_spec(shape):
        nd = len(shape)
        return pl.BlockSpec(shape, lambda l, _n=nd: (0,) * _n)

    def layer_spec(shape):        # per-layer slab, leading LAYERS axis squeezed
        nd = len(shape)
        return pl.BlockSpec((None,) + shape, lambda l, _n=nd: (l,) + (0,) * _n)

    return pl.pallas_call(
        _bert_encoder_kernel,
        out_shape=jax.ShapeDtypeStruct((M, HID), jnp.float32),
        grid_spec=pltpu.PrefetchScalarGridSpec(
            num_scalar_prefetch=0,
            grid=(LAYERS,),
            in_specs=[
                const_spec((M, HID)),                       # embeddings (pre-LN)
                const_spec((M, M)),                         # block-diag additive mask
                const_spec((1, HID)), const_spec((1, HID)),  # embedding LN
                layer_spec((HID, 3 * HID)), layer_spec((1, 3 * HID)),   # fused QKV
                layer_spec((HID, HID)), layer_spec((1, HID)),           # out proj
                layer_spec((1, HID)), layer_spec((1, HID)),             # LN1
                layer_spec((HID, FFN)), layer_spec((1, FFN)),           # FFN in
                layer_spec((FFN, HID)), layer_spec((1, HID)),           # FFN out
                layer_spec((1, HID)), layer_spec((1, HID)),             # LN2
            ],
            out_specs=const_spec((M, HID)),
            scratch_shapes=[pltpu.VMEM((M, HID), jnp.float32)],   # hidden-state carry
        ),
        compiler_params=pltpu.CompilerParams(
            dimension_semantics=("arbitrary",)),       # sequential layer axis
    )(
        h_emb, mask2d,
        params["emb_ln_g"], params["emb_ln_b"],
        params["qkv_w"], params["qkv_b"],
        params["o_w"], params["o_b"],
        params["ln1_g"], params["ln1_b"],
        params["i_w"], params["i_b"],
        params["f_w"], params["f_b"],
        params["ln2_g"], params["ln2_b"],
    )


# ----------------------------- parameters (deterministic) ------------------------
def init_params(key):
    def normal(k, shape, dtype):
        return (jax.random.normal(k, shape, dtype=jnp.float32) * 0.02).astype(dtype)

    ks = iter(jax.random.split(key, 8))
    L = LAYERS
    return {
        # embeddings / embedding-LN (f32)
        "word_emb": normal(next(ks), (VOCAB, HID), jnp.float32),
        "pos_emb": normal(next(ks), (MAX_POS, HID), jnp.float32),
        "type_emb": normal(next(ks), (TYPE_VOCAB, HID), jnp.float32),
        "emb_ln_g": jnp.ones((1, HID), jnp.float32),
        "emb_ln_b": jnp.zeros((1, HID), jnp.float32),
        # per-layer weights stacked on a leading LAYERS axis; big mats in bf16
        "qkv_w": normal(next(ks), (L, HID, 3 * HID), jnp.bfloat16),
        "qkv_b": jnp.zeros((L, 1, 3 * HID), jnp.float32),
        "o_w": normal(next(ks), (L, HID, HID), jnp.bfloat16),
        "o_b": jnp.zeros((L, 1, HID), jnp.float32),
        "ln1_g": jnp.ones((L, 1, HID), jnp.float32),
        "ln1_b": jnp.zeros((L, 1, HID), jnp.float32),
        "i_w": normal(next(ks), (L, HID, FFN), jnp.bfloat16),
        "i_b": jnp.zeros((L, 1, FFN), jnp.float32),
        "f_w": normal(next(ks), (L, FFN, HID), jnp.bfloat16),
        "f_b": jnp.zeros((L, 1, HID), jnp.float32),
        "ln2_g": jnp.ones((L, 1, HID), jnp.float32),
        "ln2_b": jnp.zeros((L, 1, HID), jnp.float32),
    }


# ----------------------------- forward pass ---------------------------------------
@jax.jit
def bert_forward(params, x, segs, mask):
    """Equivalent of Bert.forward(x, segs, mask) -> top_vec [B, S, HID]."""
    b, s = x.shape
    # Embedding gathers stay in plain JAX (no clean Pallas equivalent for tiny gathers).
    h = (
        params["word_emb"][x]
        + params["pos_emb"][jnp.arange(s)][None, :, :]
        + params["type_emb"][segs]
    ).reshape(b * s, HID)

    # BERT additive key mask, extended block-diagonally over the flattened
    # (batch*seq) rows so the kernel can fold the batch dim into the matmul rows.
    key_mask = ((1.0 - mask.astype(jnp.float32)) * -10000.0).reshape(b * s)
    rows = jnp.arange(b * s) // s
    mask2d = jnp.where(rows[:, None] == rows[None, :],
                       key_mask[None, :], jnp.float32(-10000.0))     # [M, M]

    top = bert_encoder(h, mask2d, params)          # one fused pallas_call
    return top.reshape(b, s, HID)


# ----------------------------- main -------------------------------------------------
if __name__ == "__main__":
    key = jax.random.PRNGKey(0)
    k_param, k_tok, k_seg = jax.random.split(key, 3)

    params = init_params(k_param)
    x = jax.random.randint(k_tok, (B, S), 0, VOCAB, dtype=jnp.int32)
    segs = jax.random.randint(k_seg, (B, S), 0, TYPE_VOCAB, dtype=jnp.int32)
    # mask: 1 = attend, 0 = padding (last two positions of batch element 1 padded)
    mask = jnp.ones((B, S), dtype=jnp.float32).at[1, -2:].set(0.0)

    top_vec = bert_forward(params, x, segs, mask)
    jax.block_until_ready(top_vec)
    assert top_vec.shape == (B, S, HID)
    assert bool(jnp.all(jnp.isfinite(top_vec)))
    print("KERNEL_OK")
</pallas_src>

<mosaic_0001>
module attributes {stable_mosaic.version = 11 : i64} {
  func.func @_bert_encoder_kernel(%arg0: i32, %arg1: memref<16x32xf32, #tpu.memory_space<vmem>>, %arg2: memref<16x16xf32, #tpu.memory_space<vmem>>, %arg3: memref<1x32xf32, #tpu.memory_space<vmem>>, %arg4: memref<1x32xf32, #tpu.memory_space<vmem>>, %arg5: memref<1x32x96xbf16, #tpu.memory_space<vmem>>, %arg6: memref<1x1x96xf32, #tpu.memory_space<vmem>>, %arg7: memref<1x32x32xbf16, #tpu.memory_space<vmem>>, %arg8: memref<1x1x32xf32, #tpu.memory_space<vmem>>, %arg9: memref<1x1x32xf32, #tpu.memory_space<vmem>>, %arg10: memref<1x1x32xf32, #tpu.memory_space<vmem>>, %arg11: memref<1x32x64xbf16, #tpu.memory_space<vmem>>, %arg12: memref<1x1x64xf32, #tpu.memory_space<vmem>>, %arg13: memref<1x64x32xbf16, #tpu.memory_space<vmem>>, %arg14: memref<1x1x32xf32, #tpu.memory_space<vmem>>, %arg15: memref<1x1x32xf32, #tpu.memory_space<vmem>>, %arg16: memref<1x1x32xf32, #tpu.memory_space<vmem>>, %arg17: memref<16x32xf32, #tpu.memory_space<vmem>>, %arg18: memref<16x32xf32, #tpu.memory_space<vmem>>) attributes {dimension_semantics = [#tpu.dimension_semantics<arbitrary>], iteration_bounds = array<i64: 2>, scalar_prefetch = 0 : i64, scratch_operands = 1 : i64, tpu.core_type = #tpu.core_type<tc>, window_params = [{pipeline_mode = #tpu.pipeline_mode<synchronous>, transform_indices = @transform_0, window_bounds = array<i64: 16, 32>}, {pipeline_mode = #tpu.pipeline_mode<synchronous>, transform_indices = @transform_1, window_bounds = array<i64: 16, 16>}, {pipeline_mode = #tpu.pipeline_mode<synchronous>, transform_indices = @transform_2, window_bounds = array<i64: 1, 32>}, {pipeline_mode = #tpu.pipeline_mode<synchronous>, transform_indices = @transform_3, window_bounds = array<i64: 1, 32>}, {transform_indices = @transform_4, window_bounds = array<i64: 1, 32, 96>}, {transform_indices = @transform_5, window_bounds = array<i64: 1, 1, 96>}, {transform_indices = @transform_6, window_bounds = array<i64: 1, 32, 32>}, {transform_indices = @transform_7, window_bounds = array<i64: 1, 1, 32>}, {transform_indices = @transform_8, window_bounds = array<i64: 1, 1, 32>}, {transform_indices = @transform_9, window_bounds = array<i64: 1, 1, 32>}, {transform_indices = @transform_10, window_bounds = array<i64: 1, 32, 64>}, {transform_indices = @transform_11, window_bounds = array<i64: 1, 1, 64>}, {transform_indices = @transform_12, window_bounds = array<i64: 1, 64, 32>}, {transform_indices = @transform_13, window_bounds = array<i64: 1, 1, 32>}, {transform_indices = @transform_14, window_bounds = array<i64: 1, 1, 32>}, {transform_indices = @transform_15, window_bounds = array<i64: 1, 1, 32>}, {pipeline_mode = #tpu.pipeline_mode<synchronous>, transform_indices = @transform_16, window_bounds = array<i64: 16, 32>}]} {
    %c0_i32 = arith.constant 0 : i32
    %0 = arith.cmpi eq, %arg0, %c0_i32 : i32
    %1 = arith.extui %0 : i1 to i32
    %c0_i32_0 = arith.constant 0 : i32
    %2 = arith.cmpi ne, %1, %c0_i32_0 : i32
    scf.if %2 {
      %c0_80 = arith.constant 0 : index
      %c0_81 = arith.constant 0 : index
      %182 = vector.load %arg1[%c0_80, %c0_81] : memref<16x32xf32, #tpu.memory_space<vmem>>, vector<16x32xf32>
      %c0_82 = arith.constant 0 : index
      %c0_83 = arith.constant 0 : index
      %183 = vector.load %arg3[%c0_82, %c0_83] : memref<1x32xf32, #tpu.memory_space<vmem>>, vector<1x32xf32>
      %c0_84 = arith.constant 0 : index
      %c0_85 = arith.constant 0 : index
      %184 = vector.load %arg4[%c0_84, %c0_85] : memref<1x32xf32, #tpu.memory_space<vmem>>, vector<1x32xf32>
      %cst_86 = arith.constant dense<0.000000e+00> : vector<16xf32>
      %185 = vector.multi_reduction <add>, %182, %cst_86 [1] : vector<16x32xf32> to vector<16xf32>
      %186 = vector.shape_cast %185 : vector<16xf32> to vector<16x1xf32>
      %cst_87 = arith.constant 3.200000e+01 : f32
      %187 = vector.broadcast %cst_87 : f32 to vector<16x1xf32>
      %188 = arith.divf %186, %187 : vector<16x1xf32>
      %189 = vector.broadcast %188 : vector<16x1xf32> to vector<16x32xf32>
      %190 = arith.subf %182, %189 : vector<16x32xf32>
      %191 = arith.mulf %190, %190 : vector<16x32xf32>
      %cst_88 = arith.constant dense<0.000000e+00> : vector<16xf32>
      %192 = vector.multi_reduction <add>, %191, %cst_88 [1] : vector<16x32xf32> to vector<16xf32>
      %193 = vector.shape_cast %192 : vector<16xf32> to vector<16x1xf32>
      %cst_89 = arith.constant 3.200000e+01 : f32
      %194 = vector.broadcast %cst_89 : f32 to vector<16x1xf32>
      %195 = arith.divf %193, %194 : vector<16x1xf32>
      %196 = vector.broadcast %188 : vector<16x1xf32> to vector<16x32xf32>
      %197 = arith.subf %182, %196 : vector<16x32xf32>
      %cst_90 = arith.constant 9.99999996E-13 : f32
      %198 = vector.broadcast %cst_90 : f32 to vector<16x1xf32>
      %199 = arith.addf %195, %198 : vector<16x1xf32>
      %200 = math.rsqrt %199 : vector<16x1xf32>
      %201 = vector.broadcast %200 : vector<16x1xf32> to vector<16x32xf32>
      %202 = arith.mulf %197, %201 : vector<16x32xf32>
      %203 = vector.broadcast %183 : vector<1x32xf32> to vector<16x32xf32>
      %204 = arith.mulf %202, %203 : vector<16x32xf32>
      %205 = vector.broadcast %184 : vector<1x32xf32> to vector<16x32xf32>
      %206 = arith.addf %204, %205 : vector<16x32xf32>
      %c0_91 = arith.constant 0 : index
      %c0_92 = arith.constant 0 : index
      %207 = vector.load %arg18[%c0_91, %c0_92] : memref<16x32xf32, #tpu.memory_space<vmem>>, vector<16x32xf32>
      tpu.vector_store %arg18[%c0_91, %c0_92], %206 {strides = array<i32>} : memref<16x32xf32, #tpu.memory_space<vmem>>, vector<16x32xf32>,
    } else {
    }
    %c0 = arith.constant 0 : index
    %c0_1 = arith.constant 0 : index
    %3 = vector.load %arg18[%c0, %c0_1] : memref<16x32xf32, #tpu.memory_space<vmem>>, vector<16x32xf32>
    %4 = arith.truncf %3 : vector<16x32xf32> to vector<16x32xbf16>
    %c0_2 = arith.constant 0 : index
    %c0_3 = arith.constant 0 : index
    %c0_4 = arith.constant 0 : index
    %5 = vector.load %arg5[%c0_2, %c0_3, %c0_4] : memref<1x32x96xbf16, #tpu.memory_space<vmem>>, vector<1x32x96xbf16>
    %6 = vector.shape_cast %5 : vector<1x32x96xbf16> to vector<32x96xbf16>
    %cst = arith.constant dense<0.000000e+00> : vector<16x96xf32>
    %7 = tpu.matmul %4, %6, %cst {dimension_numbers = #tpu.dot_dimension_numbers<[1], [0], [0], [1], [0, 0, 1, 1], [], []>} : vector<16x32xbf16>, vector<32x96xbf16>, vector<16x96xf32> -> vector<16x96xf32>
    %c0_5 = arith.constant 0 : index
    %c0_6 = arith.constant 0 : index
    %c0_7 = arith.constant 0 : index
    %8 = vector.load %arg6[%c0_5, %c0_6, %c0_7] : memref<1x1x96xf32, #tpu.memory_space<vmem>>, vector<1x1x96xf32>
    %9 = vector.shape_cast %8 : vector<1x1x96xf32> to vector<1x96xf32>
    %10 = vector.broadcast %9 : vector<1x96xf32> to vector<16x96xf32>
    %11 = arith.addf %7, %10 : vector<16x96xf32>
    %12 = arith.truncf %11 : vector<16x96xf32> to vector<16x96xbf16>
    %c0_8 = arith.constant 0 : index
    %c0_9 = arith.constant 0 : index
    %13 = vector.load %arg2[%c0_8, %c0_9] : memref<16x16xf32, #tpu.memory_space<vmem>>, vector<16x16xf32>
    %14 = vector.extract_strided_slice %12 {offsets = [0, 0], sizes = [16, 8], strides = [1, 1]} : vector<16x96xbf16> to vector<16x8xbf16>
    %15 = vector.extract_strided_slice %12 {offsets = [0, 32], sizes = [16, 8], strides = [1, 1]} : vector<16x96xbf16> to vector<16x8xbf16>
    %16 = vector.extract_strided_slice %12 {offsets = [0, 64], sizes = [16, 8], strides = [1, 1]} : vector<16x96xbf16> to vector<16x8xbf16>
    %cst_10 = arith.constant dense<0.000000e+00> : vector<16x16xf32>
    %17 = tpu.matmul %14, %15, %cst_10 {dimension_numbers = #tpu.dot_dimension_numbers<[1], [1], [0], [0], [0, 0, 1, 0], [], []>} : vector<16x8xbf16>, vector<16x8xbf16>, vector<16x16xf32> -> vector<16x16xf32>
    %cst_11 = arith.constant 0.353553385 : f32
    %18 = vector.broadcast %cst_11 : f32 to vector<16x16xf32>
    %19 = arith.mulf %17, %18 : vector<16x16xf32>
    %20 = arith.addf %19, %13 : vector<16x16xf32>
    %cst_12 = arith.constant dense<0xFF800000> : vector<16xf32>
    %21 = vector.multi_reduction <maximumf>, %20, %cst_12 [1] : vector<16x16xf32> to vector<16xf32>
    %22 = vector.shape_cast %21 : vector<16xf32> to vector<16x1xf32>
    %23 = vector.broadcast %22 : vector<16x1xf32> to vector<16x16xf32>
    %24 = arith.subf %20, %23 : vector<16x16xf32>
    %25 = math.exp %24 : vector<16x16xf32>
    %cst_13 = arith.constant dense<0.000000e+00> : vector<16xf32>
    %26 = vector.multi_reduction <add>, %25, %cst_13 [1] : vector<16x16xf32> to vector<16xf32>
    %27 = vector.shape_cast %26 : vector<16xf32> to vector<16x1xf32>
    %28 = vector.broadcast %27 : vector<16x1xf32> to vector<16x16xf32>
    %29 = arith.divf %25, %28 : vector<16x16xf32>
    %30 = arith.truncf %29 : vector<16x16xf32> to vector<16x16xbf16>
    %cst_14 = arith.constant dense<0.000000e+00> : vector<16x8xf32>
    %31 = tpu.matmul %30, %16, %cst_14 {dimension_numbers = #tpu.dot_dimension_numbers<[1], [0], [0], [1], [0, 0, 1, 1], [], []>} : vector<16x16xbf16>, vector<16x8xbf16>, vector<16x8xf32> -> vector<16x8xf32>
    %32 = vector.extract_strided_slice %12 {offsets = [0, 8], sizes = [16, 8], strides = [1, 1]} : vector<16x96xbf16> to vector<16x8xbf16>
    %33 = vector.extract_strided_slice %12 {offsets = [0, 40], sizes = [16, 8], strides = [1, 1]} : vector<16x96xbf16> to vector<16x8xbf16>
    %34 = vector.extract_strided_slice %12 {offsets = [0, 72], sizes = [16, 8], strides = [1, 1]} : vector<16x96xbf16> to vector<16x8xbf16>
    %cst_15 = arith.constant dense<0.000000e+00> : vector<16x16xf32>
    %35 = tpu.matmul %32, %33, %cst_15 {dimension_numbers = #tpu.dot_dimension_numbers<[1], [1], [0], [0], [0, 0, 1, 0], [], []>} : vector<16x8xbf16>, vector<16x8xbf16>, vector<16x16xf32> -> vector<16x16xf32>
    %cst_16 = arith.constant 0.353553385 : f32
    %36 = vector.broadcast %cst_16 : f32 to vector<16x16xf32>
    %37 = arith.mulf %35, %36 : vector<16x16xf32>
    %38 = arith.addf %37, %13 : vector<16x16xf32>
    %cst_17 = arith.constant dense<0xFF800000> : vector<16xf32>
    %39 = vector.multi_reduction <maximumf>, %38, %cst_17 [1] : vector<16x16xf32> to vector<16xf32>
    %40 = vector.shape_cast %39 : vector<16xf32> to vector<16x1xf32>
    %41 = vector.broadcast %40 : vector<16x1xf32> to vector<16x16xf32>
    %42 = arith.subf %38, %41 : vector<16x16xf32>
    %43 = math.exp %42 : vector<16x16xf32>
    %cst_18 = arith.constant dense<0.000000e+00> : vector<16xf32>
    %44 = vector.multi_reduction <add>, %43, %cst_18 [1] : vector<16x16xf32> to vector<16xf32>
    %45 = vector.shape_cast %44 : vector<16xf32> to vector<16x1xf32>
    %46 = vector.broadcast %45 : vector<16x1xf32> to vector<16x16xf32>
    %47 = arith.divf %43, %46 : vector<16x16xf32>
    %48 = arith.truncf %47 : vector<16x16xf32> to vector<16x16xbf16>
    %cst_19 = arith.constant dense<0.000000e+00> : vector<16x8xf32>
    %49 = tpu.matmul %48, %34, %cst_19 {dimension_numbers = #tpu.dot_dimension_numbers<[1], [0], [0], [1], [0, 0, 1, 1], [], []>} : vector<16x16xbf16>, vector<16x8xbf16>, vector<16x8xf32> -> vector<16x8xf32>
    %50 = vector.extract_strided_slice %12 {offsets = [0, 16], sizes = [16, 8], strides = [1, 1]} : vector<16x96xbf16> to vector<16x8xbf16>
    %51 = vector.extract_strided_slice %12 {offsets = [0, 48], sizes = [16, 8], strides = [1, 1]} : vector<16x96xbf16> to vector<16x8xbf16>
    %52 = vector.extract_strided_slice %12 {offsets = [0, 80], sizes = [16, 8], strides = [1, 1]} : vector<16x96xbf16> to vector<16x8xbf16>
    %cst_20 = arith.constant dense<0.000000e+00> : vector<16x16xf32>
    %53 = tpu.matmul %50, %51, %cst_20 {dimension_numbers = #tpu.dot_dimension_numbers<[1], [1], [0], [0], [0, 0, 1, 0], [], []>} : vector<16x8xbf16>, vector<16x8xbf16>, vector<16x16xf32> -> vector<16x16xf32>
    %cst_21 = arith.constant 0.353553385 : f32
    %54 = vector.broadcast %cst_21 : f32 to vector<16x16xf32>
    %55 = arith.mulf %53, %54 : vector<16x16xf32>
    %56 = arith.addf %55, %13 : vector<16x16xf32>
    %cst_22 = arith.constant dense<0xFF800000> : vector<16xf32>
    %57 = vector.multi_reduction <maximumf>, %56, %cst_22 [1] : vector<16x16xf32> to vector<16xf32>
    %58 = vector.shape_cast %57 : vector<16xf32> to vector<16x1xf32>
    %59 = vector.broadcast %58 : vector<16x1xf32> to vector<16x16xf32>
    %60 = arith.subf %56, %59 : vector<16x16xf32>
    %61 = math.exp %60 : vector<16x16xf32>
    %cst_23 = arith.constant dense<0.000000e+00> : vector<16xf32>
    %62 = vector.multi_reduction <add>, %61, %cst_23 [1] : vector<16x16xf32> to vector<16xf32>
    %63 = vector.shape_cast %62 : vector<16xf32> to vector<16x1xf32>
    %64 = vector.broadcast %63 : vector<16x1xf32> to vector<16x16xf32>
    %65 = arith.divf %61, %64 : vector<16x16xf32>
    %66 = arith.truncf %65 : vector<16x16xf32> to vector<16x16xbf16>
    %cst_24 = arith.constant dense<0.000000e+00> : vector<16x8xf32>
    %67 = tpu.matmul %66, %52, %cst_24 {dimension_numbers = #tpu.dot_dimension_numbers<[1], [0], [0], [1], [0, 0, 1, 1], [], []>} : vector<16x16xbf16>, vector<16x8xbf16>, vector<16x8xf32> -> vector<16x8xf32>
    %68 = vector.extract_strided_slice %12 {offsets = [0, 24], sizes = [16, 8], strides = [1, 1]} : vector<16x96xbf16> to vector<16x8xbf16>
    %69 = vector.extract_strided_slice %12 {offsets = [0, 56], sizes = [16, 8], strides = [1, 1]} : vector<16x96xbf16> to vector<16x8xbf16>
    %70 = vector.extract_strided_slice %12 {offsets = [0, 88], sizes = [16, 8], strides = [1, 1]} : vector<16x96xbf16> to vector<16x8xbf16>
    %cst_25 = arith.constant dense<0.000000e+00> : vector<16x16xf32>
    %71 = tpu.matmul %68, %69, %cst_25 {dimension_numbers = #tpu.dot_dimension_numbers<[1], [1], [0], [0], [0, 0, 1, 0], [], []>} : vector<16x8xbf16>, vector<16x8xbf16>, vector<16x16xf32> -> vector<16x16xf32>
    %cst_26 = arith.constant 0.353553385 : f32
    %72 = vector.broadcast %cst_26 : f32 to vector<16x16xf32>
    %73 = arith.mulf %71, %72 : vector<16x16xf32>
    %74 = arith.addf %73, %13 : vector<16x16xf32>
    %cst_27 = arith.constant dense<0xFF800000> : vector<16xf32>
    %75 = vector.multi_reduction <maximumf>, %74, %cst_27 [1] : vector<16x16xf32> to vector<16xf32>
    %76 = vector.shape_cast %75 : vector<16xf32> to vector<16x1xf32>
    %77 = vector.broadcast %76 : vector<16x1xf32> to vector<16x16xf32>
    %78 = arith.subf %74, %77 : vector<16x16xf32>
    %79 = math.exp %78 : vector<16x16xf32>
    %cst_28 = arith.constant dense<0.000000e+00> : vector<16xf32>
    %80 = vector.multi_reduction <add>, %79, %cst_28 [1] : vector<16x16xf32> to vector<16xf32>
    %81 = vector.shape_cast %80 : vector<16xf32> to vector<16x1xf32>
    %82 = vector.broadcast %81 : vector<16x1xf32> to vector<16x16xf32>
    %83 = arith.divf %79, %82 : vector<16x16xf32>
    %84 = arith.truncf %83 : vector<16x16xf32> to vector<16x16xbf16>
    %cst_29 = arith.constant dense<0.000000e+00> : vector<16x8xf32>
    %85 = tpu.matmul %84, %70, %cst_29 {dimension_numbers = #tpu.dot_dimension_numbers<[1], [0], [0], [1], [0, 0, 1, 1], [], []>} : vector<16x16xbf16>, vector<16x8xbf16>, vector<16x8xf32> -> vector<16x8xf32>
    %86 = tpu.concatenate %31, %49, %67, %85 in 1 : vector<16x8xf32>, vector<16x8xf32>, vector<16x8xf32>, vector<16x8xf32> -> vector<16x32xf32>
    %87 = arith.truncf %86 : vector<16x32xf32> to vector<16x32xbf16>
    %c0_30 = arith.constant 0 : index
    %c0_31 = arith.constant 0 : index
    %c0_32 = arith.constant 0 : index
    %88 = vector.load %arg7[%c0_30, %c0_31, %c0_32] : memref<1x32x32xbf16, #tpu.memory_space<vmem>>, vector<1x32x32xbf16>
    %89 = vector.shape_cast %88 : vector<1x32x32xbf16> to vector<32x32xbf16>
    %cst_33 = arith.constant dense<0.000000e+00> : vector<16x32xf32>
    %90 = tpu.matmul %87, %89, %cst_33 {dimension_numbers = #tpu.dot_dimension_numbers<[1], [0], [0], [1], [0, 0, 1, 1], [], []>} : vector<16x32xbf16>, vector<32x32xbf16>, vector<16x32xf32> -> vector<16x32xf32>
    %c0_34 = arith.constant 0 : index
    %c0_35 = arith.constant 0 : index
    %c0_36 = arith.constant 0 : index
    %91 = vector.load %arg8[%c0_34, %c0_35, %c0_36] : memref<1x1x32xf32, #tpu.memory_space<vmem>>, vector<1x1x32xf32>
    %92 = vector.shape_cast %91 : vector<1x1x32xf32> to vector<1x32xf32>
    %93 = vector.broadcast %92 : vector<1x32xf32> to vector<16x32xf32>
    %94 = arith.addf %90, %93 : vector<16x32xf32>
    %95 = arith.addf %94, %3 : vector<16x32xf32>
    %c0_37 = arith.constant 0 : index
    %c0_38 = arith.constant 0 : index
    %c0_39 = arith.constant 0 : index
    %96 = vector.load %arg9[%c0_37, %c0_38, %c0_39] : memref<1x1x32xf32, #tpu.memory_space<vmem>>, vector<1x1x32xf32>
    %97 = vector.shape_cast %96 : vector<1x1x32xf32> to vector<1x32xf32>
    %c0_40 = arith.constant 0 : index
    %c0_41 = arith.constant 0 : index
    %c0_42 = arith.constant 0 : index
    %98 = vector.load %arg10[%c0_40, %c0_41, %c0_42] : memref<1x1x32xf32, #tpu.memory_space<vmem>>, vector<1x1x32xf32>
    %99 = vector.shape_cast %98 : vector<1x1x32xf32> to vector<1x32xf32>
    %cst_43 = arith.constant dense<0.000000e+00> : vector<16xf32>
    %100 = vector.multi_reduction <add>, %95, %cst_43 [1] : vector<16x32xf32> to vector<16xf32>
    %101 = vector.shape_cast %100 : vector<16xf32> to vector<16x1xf32>
    %cst_44 = arith.constant 3.200000e+01 : f32
    %102 = vector.broadcast %cst_44 : f32 to vector<16x1xf32>
    %103 = arith.divf %101, %102 : vector<16x1xf32>
    %104 = vector.broadcast %103 : vector<16x1xf32> to vector<16x32xf32>
    %105 = arith.subf %95, %104 : vector<16x32xf32>
    %106 = arith.mulf %105, %105 : vector<16x32xf32>
    %cst_45 = arith.constant dense<0.000000e+00> : vector<16xf32>
    %107 = vector.multi_reduction <add>, %106, %cst_45 [1] : vector<16x32xf32> to vector<16xf32>
    %108 = vector.shape_cast %107 : vector<16xf32> to vector<16x1xf32>
    %cst_46 = arith.constant 3.200000e+01 : f32
    %109 = vector.broadcast %cst_46 : f32 to vector<16x1xf32>
    %110 = arith.divf %108, %109 : vector<16x1xf32>
    %111 = vector.broadcast %103 : vector<16x1xf32> to vector<16x32xf32>
    %112 = arith.subf %95, %111 : vector<16x32xf32>
    %cst_47 = arith.constant 9.99999996E-13 : f32
    %113 = vector.broadcast %cst_47 : f32 to vector<16x1xf32>
    %114 = arith.addf %110, %113 : vector<16x1xf32>
    %115 = math.rsqrt %114 : vector<16x1xf32>
    %116 = vector.broadcast %115 : vector<16x1xf32> to vector<16x32xf32>
    %117 = arith.mulf %112, %116 : vector<16x32xf32>
    %118 = vector.broadcast %97 : vector<1x32xf32> to vector<16x32xf32>
    %119 = arith.mulf %117, %118 : vector<16x32xf32>
    %120 = vector.broadcast %99 : vector<1x32xf32> to vector<16x32xf32>
    %121 = arith.addf %119, %120 : vector<16x32xf32>
    %122 = arith.truncf %121 : vector<16x32xf32> to vector<16x32xbf16>
    %c0_48 = arith.constant 0 : index
    %c0_49 = arith.constant 0 : index
    %c0_50 = arith.constant 0 : index
    %123 = vector.load %arg11[%c0_48, %c0_49, %c0_50] : memref<1x32x64xbf16, #tpu.memory_space<vmem>>, vector<1x32x64xbf16>
    %124 = vector.shape_cast %123 : vector<1x32x64xbf16> to vector<32x64xbf16>
    %cst_51 = arith.constant dense<0.000000e+00> : vector<16x64xf32>
    %125 = tpu.matmul %122, %124, %cst_51 {dimension_numbers = #tpu.dot_dimension_numbers<[1], [0], [0], [1], [0, 0, 1, 1], [], []>} : vector<16x32xbf16>, vector<32x64xbf16>, vector<16x64xf32> -> vector<16x64xf32>
    %c0_52 = arith.constant 0 : index
    %c0_53 = arith.constant 0 : index
    %c0_54 = arith.constant 0 : index
    %126 = vector.load %arg12[%c0_52, %c0_53, %c0_54] : memref<1x1x64xf32, #tpu.memory_space<vmem>>, vector<1x1x64xf32>
    %127 = vector.shape_cast %126 : vector<1x1x64xf32> to vector<1x64xf32>
    %128 = vector.broadcast %127 : vector<1x64xf32> to vector<16x64xf32>
    %129 = arith.addf %125, %128 : vector<16x64xf32>
    %cst_55 = arith.constant 5.000000e-01 : f32
    %130 = vector.broadcast %cst_55 : f32 to vector<16x64xf32>
    %131 = arith.mulf %130, %129 : vector<16x64xf32>
    %cst_56 = arith.constant 4.471500e-02 : f32
    %132 = vector.broadcast %cst_56 : f32 to vector<16x64xf32>
    %133 = arith.mulf %132, %129 : vector<16x64xf32>
    %134 = arith.mulf %133, %129 : vector<16x64xf32>
    %135 = arith.mulf %134, %129 : vector<16x64xf32>
    %136 = arith.addf %129, %135 : vector<16x64xf32>
    %cst_57 = arith.constant 0.797884583 : f32
    %137 = vector.broadcast %cst_57 : f32 to vector<16x64xf32>
    %138 = arith.mulf %137, %136 : vector<16x64xf32>
    %139 = math.tanh %138 : vector<16x64xf32>
    %cst_58 = arith.constant 1.000000e+00 : f32
    %140 = vector.broadcast %cst_58 : f32 to vector<16x64xf32>
    %141 = arith.addf %140, %139 : vector<16x64xf32>
    %142 = arith.mulf %131, %141 : vector<16x64xf32>
    %143 = arith.truncf %142 : vector<16x64xf32> to vector<16x64xbf16>
    %c0_59 = arith.constant 0 : index
    %c0_60 = arith.constant 0 : index
    %c0_61 = arith.constant 0 : index
    %144 = vector.load %arg13[%c0_59, %c0_60, %c0_61] : memref<1x64x32xbf16, #tpu.memory_space<vmem>>, vector<1x64x32xbf16>
    %145 = vector.shape_cast %144 : vector<1x64x32xbf16> to vector<64x32xbf16>
    %cst_62 = arith.constant dense<0.000000e+00> : vector<16x32xf32>
    %146 = tpu.matmul %143, %145, %cst_62 {dimension_numbers = #tpu.dot_dimension_numbers<[1], [0], [0], [1], [0, 0, 1, 1], [], []>} : vector<16x64xbf16>, vector<64x32xbf16>, vector<16x32xf32> -> vector<16x32xf32>
    %c0_63 = arith.constant 0 : index
    %c0_64 = arith.constant 0 : index
    %c0_65 = arith.constant 0 : index
    %147 = vector.load %arg14[%c0_63, %c0_64, %c0_65] : memref<1x1x32xf32, #tpu.memory_space<vmem>>, vector<1x1x32xf32>
    %148 = vector.shape_cast %147 : vector<1x1x32xf32> to vector<1x32xf32>
    %149 = vector.broadcast %148 : vector<1x32xf32> to vector<16x32xf32>
    %150 = arith.addf %146, %149 : vector<16x32xf32>
    %151 = arith.addf %150, %121 : vector<16x32xf32>
    %c0_66 = arith.constant 0 : index
    %c0_67 = arith.constant 0 : index
    %c0_68 = arith.constant 0 : index
    %152 = vector.load %arg15[%c0_66, %c0_67, %c0_68] : memref<1x1x32xf32, #tpu.memory_space<vmem>>, vector<1x1x32xf32>
    %153 = vector.shape_cast %152 : vector<1x1x32xf32> to vector<1x32xf32>
    %c0_69 = arith.constant 0 : index
    %c0_70 = arith.constant 0 : index
    %c0_71 = arith.constant 0 : index
    %154 = vector.load %arg16[%c0_69, %c0_70, %c0_71] : memref<1x1x32xf32, #tpu.memory_space<vmem>>, vector<1x1x32xf32>
    %155 = vector.shape_cast %154 : vector<1x1x32xf32> to vector<1x32xf32>
    %cst_72 = arith.constant dense<0.000000e+00> : vector<16xf32>
    %156 = vector.multi_reduction <add>, %151, %cst_72 [1] : vector<16x32xf32> to vector<16xf32>
    %157 = vector.shape_cast %156 : vector<16xf32> to vector<16x1xf32>
    %cst_73 = arith.constant 3.200000e+01 : f32
    %158 = vector.broadcast %cst_73 : f32 to vector<16x1xf32>
    %159 = arith.divf %157, %158 : vector<16x1xf32>
    %160 = vector.broadcast %159 : vector<16x1xf32> to vector<16x32xf32>
    %161 = arith.subf %151, %160 : vector<16x32xf32>
    %162 = arith.mulf %161, %161 : vector<16x32xf32>
    %cst_74 = arith.constant dense<0.000000e+00> : vector<16xf32>
    %163 = vector.multi_reduction <add>, %162, %cst_74 [1] : vector<16x32xf32> to vector<16xf32>
    %164 = vector.shape_cast %163 : vector<16xf32> to vector<16x1xf32>
    %cst_75 = arith.constant 3.200000e+01 : f32
    %165 = vector.broadcast %cst_75 : f32 to vector<16x1xf32>
    %166 = arith.divf %164, %165 : vector<16x1xf32>
    %167 = vector.broadcast %159 : vector<16x1xf32> to vector<16x32xf32>
    %168 = arith.subf %151, %167 : vector<16x32xf32>
    %cst_76 = arith.constant 9.99999996E-13 : f32
    %169 = vector.broadcast %cst_76 : f32 to vector<16x1xf32>
    %170 = arith.addf %166, %169 : vector<16x1xf32>
    %171 = math.rsqrt %170 : vector<16x1xf32>
    %172 = vector.broadcast %171 : vector<16x1xf32> to vector<16x32xf32>
    %173 = arith.mulf %168, %172 : vector<16x32xf32>
    %174 = vector.broadcast %153 : vector<1x32xf32> to vector<16x32xf32>
    %175 = arith.mulf %173, %174 : vector<16x32xf32>
    %176 = vector.broadcast %155 : vector<1x32xf32> to vector<16x32xf32>
    %177 = arith.addf %175, %176 : vector<16x32xf32>
    %c0_77 = arith.constant 0 : index
    %c0_78 = arith.constant 0 : index
    %178 = vector.load %arg18[%c0_77, %c0_78] : memref<16x32xf32, #tpu.memory_space<vmem>>, vector<16x32xf32>
    tpu.vector_store %arg18[%c0_77, %c0_78], %177 {strides = array<i32>} : memref<16x32xf32, #tpu.memory_space<vmem>>, vector<16x32xf32>,
    %c1_i32 = arith.constant 1 : i32
    %179 = arith.cmpi eq, %arg0, %c1_i32 : i32
    %180 = arith.extui %179 : i1 to i32
    %c0_i32_79 = arith.constant 0 : i32
    %181 = arith.cmpi ne, %180, %c0_i32_79 : i32
    scf.if %181 {
      %c0_80 = arith.constant 0 : index
      %c0_81 = arith.constant 0 : index
      %182 = vector.load %arg17[%c0_80, %c0_81] : memref<16x32xf32, #tpu.memory_space<vmem>>, vector<16x32xf32>
      tpu.vector_store %arg17[%c0_80, %c0_81], %177 {strides = array<i32>} : memref<16x32xf32, #tpu.memory_space<vmem>>, vector<16x32xf32>,
    } else {
    }
    return
  }
  func.func @transform_0(%arg0: i32) -> (i32, i32) {
    %c0_i32 = arith.constant 0 : i32
    %c0_i32_0 = arith.constant 0 : i32
    %c0_i32_1 = arith.constant 0 : i32
    return %c0_i32, %c0_i32_0 : i32, i32
  }
  func.func @transform_1(%arg0: i32) -> (i32, i32) {
    %c0_i32 = arith.constant 0 : i32
    %c0_i32_0 = arith.constant 0 : i32
    %c0_i32_1 = arith.constant 0 : i32
    return %c0_i32, %c0_i32_0 : i32, i32
  }
  func.func @transform_2(%arg0: i32) -> (i32, i32) {
    %c0_i32 = arith.constant 0 : i32
    %c0_i32_0 = arith.constant 0 : i32
    %c0_i32_1 = arith.constant 0 : i32
    return %c0_i32, %c0_i32_0 : i32, i32
  }
  func.func @transform_3(%arg0: i32) -> (i32, i32) {
    %c0_i32 = arith.constant 0 : i32
    %c0_i32_0 = arith.constant 0 : i32
    %c0_i32_1 = arith.constant 0 : i32
    return %c0_i32, %c0_i32_0 : i32, i32
  }
  func.func @transform_4(%arg0: i32) -> (i32, i32, i32) {
    %c0_i32 = arith.constant 0 : i32
    %c0_i32_0 = arith.constant 0 : i32
    %c0_i32_1 = arith.constant 0 : i32
    return %arg0, %c0_i32, %c0_i32_0 : i32, i32, i32
  }
  func.func @transform_5(%arg0: i32) -> (i32, i32, i32) {
    %c0_i32 = arith.constant 0 : i32
    %c0_i32_0 = arith.constant 0 : i32
    %c0_i32_1 = arith.constant 0 : i32
    return %arg0, %c0_i32, %c0_i32_0 : i32, i32, i32
  }
  func.func @transform_6(%arg0: i32) -> (i32, i32, i32) {
    %c0_i32 = arith.constant 0 : i32
    %c0_i32_0 = arith.constant 0 : i32
    %c0_i32_1 = arith.constant 0 : i32
    return %arg0, %c0_i32, %c0_i32_0 : i32, i32, i32
  }
  func.func @transform_7(%arg0: i32) -> (i32, i32, i32) {
    %c0_i32 = arith.constant 0 : i32
    %c0_i32_0 = arith.constant 0 : i32
    %c0_i32_1 = arith.constant 0 : i32
    return %arg0, %c0_i32, %c0_i32_0 : i32, i32, i32
  }
  func.func @transform_8(%arg0: i32) -> (i32, i32, i32) {
    %c0_i32 = arith.constant 0 : i32
    %c0_i32_0 = arith.constant 0 : i32
    %c0_i32_1 = arith.constant 0 : i32
    return %arg0, %c0_i32, %c0_i32_0 : i32, i32, i32
  }
  func.func @transform_9(%arg0: i32) -> (i32, i32, i32) {
    %c0_i32 = arith.constant 0 : i32
    %c0_i32_0 = arith.constant 0 : i32
    %c0_i32_1 = arith.constant 0 : i32
    return %arg0, %c0_i32, %c0_i32_0 : i32, i32, i32
  }
  func.func @transform_10(%arg0: i32) -> (i32, i32, i32) {
    %c0_i32 = arith.constant 0 : i32
    %c0_i32_0 = arith.constant 0 : i32
    %c0_i32_1 = arith.constant 0 : i32
    return %arg0, %c0_i32, %c0_i32_0 : i32, i32, i32
  }
  func.func @transform_11(%arg0: i32) -> (i32, i32, i32) {
    %c0_i32 = arith.constant 0 : i32
    %c0_i32_0 = arith.constant 0 : i32
    %c0_i32_1 = arith.constant 0 : i32
    return %arg0, %c0_i32, %c0_i32_0 : i32, i32, i32
  }
  func.func @transform_12(%arg0: i32) -> (i32, i32, i32) {
    %c0_i32 = arith.constant 0 : i32
    %c0_i32_0 = arith.constant 0 : i32
    %c0_i32_1 = arith.constant 0 : i32
    return %arg0, %c0_i32, %c0_i32_0 : i32, i32, i32
  }
  func.func @transform_13(%arg0: i32) -> (i32, i32, i32) {
    %c0_i32 = arith.constant 0 : i32
    %c0_i32_0 = arith.constant 0 : i32
    %c0_i32_1 = arith.constant 0 : i32
    return %arg0, %c0_i32, %c0_i32_0 : i32, i32, i32
  }
  func.func @transform_14(%arg0: i32) -> (i32, i32, i32) {
    %c0_i32 = arith.constant 0 : i32
    %c0_i32_0 = arith.constant 0 : i32
    %c0_i32_1 = arith.constant 0 : i32
    return %arg0, %c0_i32, %c0_i32_0 : i32, i32, i32
  }
  func.func @transform_15(%arg0: i32) -> (i32, i32, i32) {
    %c0_i32 = arith.constant 0 : i32
    %c0_i32_0 = arith.constant 0 : i32
    %c0_i32_1 = arith.constant 0 : i32
    return %arg0, %c0_i32, %c0_i32_0 : i32, i32, i32
  }
  func.func @transform_16(%arg0: i32) -> (i32, i32) {
    %c0_i32 = arith.constant 0 : i32
    %c0_i32_0 = arith.constant 0 : i32
    %c0_i32_1 = arith.constant 0 : i32
    return %c0_i32, %c0_i32_0 : i32, i32
  }
}

</mosaic_0001>

<llo_original>
// kernel: bert_forward.1
$region0: #{bert_forward.1}
  #allocation0 [shape = 'u32[]', space=smem, size = 0x4, offset = 0x4, fixed_abs, tag = 'smem constant byte address 0x4 - core index']
  #allocation1 [shape = 'u32[144,128]{1,0:T(1,128)}', space=vmem, size = 0x12000, scoped, tag = 'internal scratch']
  #allocation2 [shape = 'f32[16,32]{1,0:T(8,128)}', space=vmem, size = 0x2000, scoped, tag = 'scratch operand']
  %s0 = inlined_call_operand.vmem [shape: f32[16,32], index: 0, kind: input, shape index: {}]
  %s1 = inlined_call_operand.vmem [shape: f32[16,16], index: 1, kind: input, shape index: {}]
  %s2 = inlined_call_operand.vmem [shape: f32[1,32], index: 2, kind: input, shape index: {}]
  %s3 = inlined_call_operand.vmem [shape: f32[1,32], index: 3, kind: input, shape index: {}]
  %s4 = inlined_call_operand.vmem [shape: bf16[2,32,96], index: 4, kind: input, shape index: {}]
  %s5 = inlined_call_operand.vmem [shape: f32[2,1,96], index: 5, kind: input, shape index: {}]
  %s6 = inlined_call_operand.vmem [shape: bf16[2,32,32], index: 6, kind: input, shape index: {}]
  %s7 = inlined_call_operand.vmem [shape: f32[2,1,32], index: 7, kind: input, shape index: {}]
  %s8 = inlined_call_operand.vmem [shape: f32[2,1,32], index: 8, kind: input, shape index: {}]
  %s9 = inlined_call_operand.vmem [shape: f32[2,1,32], index: 9, kind: input, shape index: {}]
  %s10 = inlined_call_operand.vmem [shape: bf16[2,32,64], index: 10, kind: input, shape index: {}]
  %s11 = inlined_call_operand.vmem [shape: f32[2,1,64], index: 11, kind: input, shape index: {}]
  %s12 = inlined_call_operand.vmem [shape: bf16[2,64,32], index: 12, kind: input, shape index: {}]
  %s13 = inlined_call_operand.vmem [shape: f32[2,1,32], index: 13, kind: input, shape index: {}]
  %s14 = inlined_call_operand.vmem [shape: f32[2,1,32], index: 14, kind: input, shape index: {}]
  %s15 = inlined_call_operand.vmem [shape: f32[2,1,32], index: 15, kind: input, shape index: {}]
  %s16 = inlined_call_operand.hbm [shape: f32[16,32], index: 16, kind: output, shape index: {}]
  %s17 = sld [smem:[#allocation0]]
  $region105: #{bert_forward.1} parent=0
    _
  %s19 = ssub.s32 1, %s17
  %s20 = scalar_select 0, %s19, %s17
  $region1: #{bert_forward.1} parent=0
    #allocation3 [shape = 'u8[8192]{0}', space=vmem, size = 0x2000, scoped, tag = 'output window, operand 0, single buffered']
    #allocation4 [shape = 's32[2]{0}', space=sflag, size = 0x8, scoped, tag = 'scoped memory for bert_forward.1']
    %21 = vsyncpa [#allocation4], 0
    loop: start=0, step=1, limit=4
    $region2: #{bert_forward.1} parent=1 // loop_pre_header
      _
    $region3: #{bert_forward.1} parent=1 // loop_header
      %s23 = sphi 0, %s27
      %p24 = scmp.ge.s32.totalorder %s23, 4
      %s31 = sphi 0, %s31
      %s33 = sphi 0, %s31
      %s34 = sphi 0, %s33
      %s48 = sphi 0, %s34
      %s52 = sphi 0, %s52
      %s54 = sphi 0, %s52
      %s55 = sphi 0, %s54
      %s69 = sphi 0, %s55
      %s73 = sphi 0, %s73
      %s75 = sphi 0, %s73
      %s76 = sphi 0, %s75
      %s90 = sphi 0, %s76
      %s94 = sphi 0, %s94
      %s96 = sphi 0, %s94
      %s97 = sphi 0, %s96
      %s111 = sphi 0, %s97
      %s117 = sphi 0, %s119
      %s120 = sphi 0, %s117
      %s121 = sphi 0, %s120
      %s137 = sphi 0, %s121
      %s143 = sphi 0, %s145
      %s146 = sphi 0, %s143
      %s147 = sphi 0, %s146
      %s163 = sphi 0, %s147
      %s169 = sphi 0, %s171
      %s172 = sphi 0, %s169
      %s173 = sphi 0, %s172
      %s189 = sphi 0, %s173
      %s195 = sphi 0, %s197
      %s198 = sphi 0, %s195
      %s199 = sphi 0, %s198
      %s215 = sphi 0, %s199
      %s221 = sphi 0, %s223
      %s224 = sphi 0, %s221
      %s225 = sphi 0, %s224
      %s241 = sphi 0, %s225
      %s247 = sphi 0, %s249
      %s250 = sphi 0, %s247
      %s251 = sphi 0, %s250
      %s267 = sphi 0, %s251
      %s273 = sphi 0, %s275
      %s276 = sphi 0, %s273
      %s277 = sphi 0, %s276
      %s293 = sphi 0, %s277
      %s299 = sphi 0, %s301
      %s302 = sphi 0, %s299
      %s303 = sphi 0, %s302
      %s319 = sphi 0, %s303
      %s325 = sphi 0, %s327
      %s328 = sphi 0, %s325
      %s329 = sphi 0, %s328
      %s345 = sphi 0, %s329
      %s351 = sphi 0, %s353
      %s354 = sphi 0, %s351
      %s355 = sphi 0, %s354
      %s371 = sphi 0, %s355
      %s377 = sphi 0, %s379
      %s380 = sphi 0, %s377
      %s381 = sphi 0, %s380
      %s397 = sphi 0, %s381
      %s403 = sphi 0, %s405
      %s406 = sphi 0, %s403
      %s407 = sphi 0, %s406
      %s423 = sphi 0, %s407
      %s427 = sphi 0, %s427
      %s429 = sphi 0, %s427
      %s430 = sphi 0, %s429
      %s444 = sphi 0, %s430
    $region4: #{bert_forward.1} parent=1 // loop_header_branch
      %26 = sbr.rel (%p24) target = $region8
    $region5: #{bert_forward.1} parent=1 // loop_body
      %s28 = ssub.s32 %s23, 1
      %s29 = ssub.s32 %s23, 2
      %s30 = sadd.s32 %s23, 1
      %s32 = sadd.s32 %s31, 1
      %p35 = scmp.eq.s32.totalorder %s23, 1
      %p36 = scmp.ne.s32.totalorder %s31, %s33
      %p37 = scmp.eq.s32.totalorder %s23, 0
      %p38 = por %p36, %p37
      %p39 = scmp.ne.s32.totalorder %s31, %s33
      %p40 = scmp.eq.s32.totalorder %s28, 1
      %p41 = por %p39, %p40
      %p42 = scmp.ne.s32.totalorder %s33, %s34
      %p43 = scmp.eq.s32.totalorder %s28, 0
      %p44 = por %p42, %p43
      %p45 = scmp.ne.s32.totalorder %s33, %s34
      %p46 = scmp.eq.s32.totalorder %s29, 1
      %p47 = por %p45, %p46
      %p49 = scmp.ne.s32.totalorder %s34, %s48
      %p50 = scmp.eq.s32.totalorder %s29, 0
      %p51 = por %p49, %p50
      %s53 = sadd.s32 %s52, 1
      %p56 = scmp.eq.s32.totalorder %s23, 1
      %p57 = scmp.ne.s32.totalorder %s52, %s54
      %p58 = scmp.eq.s32.totalorder %s23, 0
      %p59 = por %p57, %p58
      %p60 = scmp.ne.s32.totalorder %s52, %s54
      %p61 = scmp.eq.s32.totalorder %s28, 1
      %p62 = por %p60, %p61
      %p63 = scmp.ne.s32.totalorder %s54, %s55
      %p64 = scmp.eq.s32.totalorder %s28, 0
      %p65 = por %p63, %p64
      %p66 = scmp.ne.s32.totalorder %s54, %s55
      %p67 = scmp.eq.s32.totalorder %s29, 1
      %p68 = por %p66, %p67
      %p70 = scmp.ne.s32.totalorder %s55, %s69
      %p71 = scmp.eq.s32.totalorder %s29, 0
      %p72 = por %p70, %p71
      %s74 = sadd.s32 %s73, 1
      %p77 = scmp.eq.s32.totalorder %s23, 1
      %p78 = scmp.ne.s32.totalorder %s73, %s75
      %p79 = scmp.eq.s32.totalorder %s23, 0
      %p80 = por %p78, %p79
      %p81 = scmp.ne.s32.totalorder %s73, %s75
      %p82 = scmp.eq.s32.totalorder %s28, 1
      %p83 = por %p81, %p82
      %p84 = scmp.ne.s32.totalorder %s75, %s76
      %p85 = scmp.eq.s32.totalorder %s28, 0
      %p86 = por %p84, %p85
      %p87 = scmp.ne.s32.totalorder %s75, %s76
      %p88 = scmp.eq.s32.totalorder %s29, 1
      %p89 = por %p87, %p88
      %p91 = scmp.ne.s32.totalorder %s76, %s90
      %p92 = scmp.eq.s32.totalorder %s29, 0
      %p93 = por %p91, %p92
      %s95 = sadd.s32 %s94, 1
      %p98 = scmp.eq.s32.totalorder %s23, 1
      %p99 = scmp.ne.s32.totalorder %s94, %s96
      %p100 = scmp.eq.s32.totalorder %s23, 0
      %p101 = por %p99, %p100
      %p102 = scmp.ne.s32.totalorder %s94, %s96
      %p103 = scmp.eq.s32.totalorder %s28, 1
      %p104 = por %p102, %p103
      %p105 = scmp.ne.s32.totalorder %s96, %s97
      %p106 = scmp.eq.s32.totalorder %s28, 0
      %p107 = por %p105, %p106
      %p108 = scmp.ne.s32.totalorder %s96, %s97
      %p109 = scmp.eq.s32.totalorder %s29, 1
      %p110 = por %p108, %p109
      %p112 = scmp.ne.s32.totalorder %s97, %s111
      %p113 = scmp.eq.s32.totalorder %s29, 0
      %p114 = por %p112, %p113
      %s115 = ssub.s32 %s23, %s30
      %p116 = scmp.eq.s32.totalorder %s115, 0
      %s118 = sadd.s32 %s117, 1
      %s119 = scalar_select %p116, %s117, %s118
      %p122 = pneg %p116
      %p123 = scmp.eq.s32.totalorder %s23, 1
      %p124 = por %p122, %p123
      %p125 = scmp.ne.s32.totalorder %s117, %s120
      %p126 = scmp.eq.s32.totalorder %s23, 0
      %p127 = por %p125, %p126
      %p128 = scmp.ne.s32.totalorder %s117, %s120
      %p129 = scmp.eq.s32.totalorder %s28, 1
      %p130 = por %p128, %p129
      %p131 = scmp.ne.s32.totalorder %s120, %s121
      %p132 = scmp.eq.s32.totalorder %s28, 0
      %p133 = por %p131, %p132
      %p134 = scmp.ne.s32.totalorder %s120, %s121
      %p135 = scmp.eq.s32.totalorder %s29, 1
      %p136 = por %p134, %p135
      %p138 = scmp.ne.s32.totalorder %s121, %s137
      %p139 = scmp.eq.s32.totalorder %s29, 0
      %p140 = por %p138, %p139
      %s141 = ssub.s32 %s23, %s30
      %p142 = scmp.eq.s32.totalorder %s141, 0
      %s144 = sadd.s32 %s143, 1
      %s145 = scalar_select %p142, %s143, %s144
      %p148 = pneg %p142
      %p149 = scmp.eq.s32.totalorder %s23, 1
      %p150 = por %p148, %p149
      %p151 = scmp.ne.s32.totalorder %s143, %s146
      %p152 = scmp.eq.s32.totalorder %s23, 0
      %p153 = por %p151, %p152
      %p154 = scmp.ne.s32.totalorder %s143, %s146
      %p155 = scmp.eq.s32.totalorder %s28, 1
      %p156 = por %p154, %p155
      %p157 = scmp.ne.s32.totalorder %s146, %s147
      %p158 = scmp.eq.s32.totalorder %s28, 0
      %p159 = por %p157, %p158
      %p160 = scmp.ne.s32.totalorder %s146, %s147
      %p161 = scmp.eq.s32.totalorder %s29, 1
      %p162 = por %p160, %p161
      %p164 = scmp.ne.s32.totalorder %s147, %s163
      %p165 = scmp.eq.s32.totalorder %s29, 0
      %p166 = por %p164, %p165
      %s167 = ssub.s32 %s23, %s30
      %p168 = scmp.eq.s32.totalorder %s167, 0
      %s170 = sadd.s32 %s169, 1
      %s171 = scalar_select %p168, %s169, %s170
      %p174 = pneg %p168
      %p175 = scmp.eq.s32.totalorder %s23, 1
      %p176 = por %p174, %p175
      %p177 = scmp.ne.s32.totalorder %s169, %s172
      %p178 = scmp.eq.s32.totalorder %s23, 0
      %p179 = por %p177, %p178
      %p180 = scmp.ne.s32.totalorder %s169, %s172
      %p181 = scmp.eq.s32.totalorder %s28, 1
      %p182 = por %p180, %p181
      %p183 = scmp.ne.s32.totalorder %s172, %s173
      %p184 = scmp.eq.s32.totalorder %s28, 0
      %p185 = por %p183, %p184
      %p186 = scmp.ne.s32.totalorder %s172, %s173
      %p187 = scmp.eq.s32.totalorder %s29, 1
      %p188 = por %p186, %p187
      %p190 = scmp.ne.s32.totalorder %s173, %s189
      %p191 = scmp.eq.s32.totalorder %s29, 0
      %p192 = por %p190, %p191
      %s193 = ssub.s32 %s23, %s30
      %p194 = scmp.eq.s32.totalorder %s193, 0
      %s196 = sadd.s32 %s195, 1
      %s197 = scalar_select %p194, %s195, %s196
      %p200 = pneg %p194
      %p201 = scmp.eq.s32.totalorder %s23, 1
      %p202 = por %p200, %p201
      %p203 = scmp.ne.s32.totalorder %s195, %s198
      %p204 = scmp.eq.s32.totalorder %s23, 0
      %p205 = por %p203, %p204
      %p206 = scmp.ne.s32.totalorder %s195, %s198
      %p207 = scmp.eq.s32.totalorder %s28, 1
      %p208 = por %p206, %p207
      %p209 = scmp.ne.s32.totalorder %s198, %s199
      %p210 = scmp.eq.s32.totalorder %s28, 0
      %p211 = por %p209, %p210
      %p212 = scmp.ne.s32.totalorder %s198, %s199
      %p213 = scmp.eq.s32.totalorder %s29, 1
      %p214 = por %p212, %p213
      %p216 = scmp.ne.s32.totalorder %s199, %s215
      %p217 = scmp.eq.s32.totalorder %s29, 0
      %p218 = por %p216, %p217
      %s219 = ssub.s32 %s23, %s30
      %p220 = scmp.eq.s32.totalorder %s219, 0
      %s222 = sadd.s32 %s221, 1
      %s223 = scalar_select %p220, %s221, %s222
      %p226 = pneg %p220
      %p227 = scmp.eq.s32.totalorder %s23, 1
      %p228 = por %p226, %p227
      %p229 = scmp.ne.s32.totalorder %s221, %s224
      %p230 = scmp.eq.s32.totalorder %s23, 0
      %p231 = por %p229, %p230
      %p232 = scmp.ne.s32.totalorder %s221, %s224
      %p233 = scmp.eq.s32.totalorder %s28, 1
      %p234 = por %p232, %p233
      %p235 = scmp.ne.s32.totalorder %s224, %s225
      %p236 = scmp.eq.s32.totalorder %s28, 0
      %p237 = por %p235, %p236
      %p238 = scmp.ne.s32.totalorder %s224, %s225
      %p239 = scmp.eq.s32.totalorder %s29, 1
      %p240 = por %p238, %p239
      %p242 = scmp.ne.s32.totalorder %s225, %s241
      %p243 = scmp.eq.s32.totalorder %s29, 0
      %p244 = por %p242, %p243
      %s245 = ssub.s32 %s23, %s30
      %p246 = scmp.eq.s32.totalorder %s245, 0
      %s248 = sadd.s32 %s247, 1
      %s249 = scalar_select %p246, %s247, %s248
      %p252 = pneg %p246
      %p253 = scmp.eq.s32.totalorder %s23, 1
      %p254 = por %p252, %p253
      %p255 = scmp.ne.s32.totalorder %s247, %s250
      %p256 = scmp.eq.s32.totalorder %s23, 0
      %p257 = por %p255, %p256
      %p258 = scmp.ne.s32.totalorder %s247, %s250
      %p259 = scmp.eq.s32.totalorder %s28, 1
      %p260 = por %p258, %p259
      %p261 = scmp.ne.s32.totalorder %s250, %s251
      %p262 = scmp.eq.s32.totalorder %s28, 0
      %p263 = por %p261, %p262
      %p264 = scmp.ne.s32.totalorder %s250, %s251
      %p265 = scmp.eq.s32.totalorder %s29, 1
      %p266 = por %p264, %p265
      %p268 = scmp.ne.s32.totalorder %s251, %s267
      %p269 = scmp.eq.s32.totalorder %s29, 0
      %p270 = por %p268, %p269
      %s271 = ssub.s32 %s23, %s30
      %p272 = scmp.eq.s32.totalorder %s271, 0
      %s274 = sadd.s32 %s273, 1
      %s275 = scalar_select %p272, %s273, %s274
      %p278 = pneg %p272
      %p279 = scmp.eq.s32.totalorder %s23, 1
      %p280 = por %p278, %p279
      %p281 = scmp.ne.s32.totalorder %s273, %s276
      %p282 = scmp.eq.s32.totalorder %s23, 0
      %p283 = por %p281, %p282
      %p284 = scmp.ne.s32.totalorder %s273, %s276
      %p285 = scmp.eq.s32.totalorder %s28, 1
      %p286 = por %p284, %p285
      %p287 = scmp.ne.s32.totalorder %s276, %s277
      %p288 = scmp.eq.s32.totalorder %s28, 0
      %p289 = por %p287, %p288
      %p290 = scmp.ne.s32.totalorder %s276, %s277
      %p291 = scmp.eq.s32.totalorder %s29, 1
      %p292 = por %p290, %p291
      %p294 = scmp.ne.s32.totalorder %s277, %s293
      %p295 = scmp.eq.s32.totalorder %s29, 0
      %p296 = por %p294, %p295
      %s297 = ssub.s32 %s23, %s30
      %p298 = scmp.eq.s32.totalorder %s297, 0
      %s300 = sadd.s32 %s299, 1
      %s301 = scalar_select %p298, %s299, %s300
      %p304 = pneg %p298
      %p305 = scmp.eq.s32.totalorder %s23, 1
      %p306 = por %p304, %p305
      %p307 = scmp.ne.s32.totalorder %s299, %s302
      %p308 = scmp.eq.s32.totalorder %s23, 0
      %p309 = por %p307, %p308
      %p310 = scmp.ne.s32.totalorder %s299, %s302
      %p311 = scmp.eq.s32.totalorder %s28, 1
      %p312 = por %p310, %p311
      %p313 = scmp.ne.s32.totalorder %s302, %s303
      %p314 = scmp.eq.s32.totalorder %s28, 0
      %p315 = por %p313, %p314
      %p316 = scmp.ne.s32.totalorder %s302, %s303
      %p317 = scmp.eq.s32.totalorder %s29, 1
      %p318 = por %p316, %p317
      %p320 = scmp.ne.s32.totalorder %s303, %s319
      %p321 = scmp.eq.s32.totalorder %s29, 0
      %p322 = por %p320, %p321
      %s323 = ssub.s32 %s23, %s30
      %p324 = scmp.eq.s32.totalorder %s323, 0
      %s326 = sadd.s32 %s325, 1
      %s327 = scalar_select %p324, %s325, %s326
      %p330 = pneg %p324
      %p331 = scmp.eq.s32.totalorder %s23, 1
      %p332 = por %p330, %p331
      %p333 = scmp.ne.s32.totalorder %s325, %s328
      %p334 = scmp.eq.s32.totalorder %s23, 0
      %p335 = por %p333, %p334
      %p336 = scmp.ne.s32.totalorder %s325, %s328
      %p337 = scmp.eq.s32.totalorder %s28, 1
      %p338 = por %p336, %p337
      %p339 = scmp.ne.s32.totalorder %s328, %s329
      %p340 = scmp.eq.s32.totalorder %s28, 0
      %p341 = por %p339, %p340
      %p342 = scmp.ne.s32.totalorder %s328, %s329
      %p343 = scmp.eq.s32.totalorder %s29, 1
      %p344 = por %p342, %p343
      %p346 = scmp.ne.s32.totalorder %s329, %s345
      %p347 = scmp.eq.s32.totalorder %s29, 0
      %p348 = por %p346, %p347
      %s349 = ssub.s32 %s23, %s30
      %p350 = scmp.eq.s32.totalorder %s349, 0
      %s352 = sadd.s32 %s351, 1
      %s353 = scalar_select %p350, %s351, %s352
      %p356 = pneg %p350
      %p357 = scmp.eq.s32.totalorder %s23, 1
      %p358 = por %p356, %p357
      %p359 = scmp.ne.s32.totalorder %s351, %s354
      %p360 = scmp.eq.s32.totalorder %s23, 0
      %p361 = por %p359, %p360
      %p362 = scmp.ne.s32.totalorder %s351, %s354
      %p363 = scmp.eq.s32.totalorder %s28, 1
      %p364 = por %p362, %p363
      %p365 = scmp.ne.s32.totalorder %s354, %s355
      %p366 = scmp.eq.s32.totalorder %s28, 0
      %p367 = por %p365, %p366
      %p368 = scmp.ne.s32.totalorder %s354, %s355
      %p369 = scmp.eq.s32.totalorder %s29, 1
      %p370 = por %p368, %p369
      %p372 = scmp.ne.s32.totalorder %s355, %s371
      %p373 = scmp.eq.s32.totalorder %s29, 0
      %p374 = por %p372, %p373
      %s375 = ssub.s32 %s23, %s30
      %p376 = scmp.eq.s32.totalorder %s375, 0
      %s378 = sadd.s32 %s377, 1
      %s379 = scalar_select %p376, %s377, %s378
      %p382 = pneg %p376
      %p383 = scmp.eq.s32.totalorder %s23, 1
      %p384 = por %p382, %p383
      %p385 = scmp.ne.s32.totalorder %s377, %s380
      %p386 = scmp.eq.s32.totalorder %s23, 0
      %p387 = por %p385, %p386
      %p388 = scmp.ne.s32.totalorder %s377, %s380
      %p389 = scmp.eq.s32.totalorder %s28, 1
      %p390 = por %p388, %p389
      %p391 = scmp.ne.s32.totalorder %s380, %s381
      %p392 = scmp.eq.s32.totalorder %s28, 0
      %p393 = por %p391, %p392
      %p394 = scmp.ne.s32.totalorder %s380, %s381
      %p395 = scmp.eq.s32.totalorder %s29, 1
      %p396 = por %p394, %p395
      %p398 = scmp.ne.s32.totalorder %s381, %s397
      %p399 = scmp.eq.s32.totalorder %s29, 0
      %p400 = por %p398, %p399
      %s401 = ssub.s32 %s23, %s30
      %p402 = scmp.eq.s32.totalorder %s401, 0
      %s404 = sadd.s32 %s403, 1
      %s405 = scalar_select %p402, %s403, %s404
      %p408 = pneg %p402
      %p409 = scmp.eq.s32.totalorder %s23, 1
      %p410 = por %p408, %p409
      %p411 = scmp.ne.s32.totalorder %s403, %s406
      %p412 = scmp.eq.s32.totalorder %s23, 0
      %p413 = por %p411, %p412
      %p414 = scmp.ne.s32.totalorder %s403, %s406
      %p415 = scmp.eq.s32.totalorder %s28, 1
      %p416 = por %p414, %p415
      %p417 = scmp.ne.s32.totalorder %s406, %s407
      %p418 = scmp.eq.s32.totalorder %s28, 0
      %p419 = por %p417, %p418
      %p420 = scmp.ne.s32.totalorder %s406, %s407
      %p421 = scmp.eq.s32.totalorder %s29, 1
      %p422 = por %p420, %p421
      %p424 = scmp.ne.s32.totalorder %s407, %s423
      %p425 = scmp.eq.s32.totalorder %s29, 0
      %p426 = por %p424, %p425
      %s428 = sadd.s32 %s427, 1
      %p431 = scmp.eq.s32.totalorder %s23, 1
      %p432 = scmp.ne.s32.totalorder %s427, %s429
      %p433 = scmp.eq.s32.totalorder %s23, 0
      %p434 = por %p432, %p433
      %p435 = scmp.ne.s32.totalorder %s427, %s429
      %p436 = scmp.eq.s32.totalorder %s28, 1
      %p437 = por %p435, %p436
      %p438 = scmp.ne.s32.totalorder %s429, %s430
      %p439 = scmp.eq.s32.totalorder %s28, 0
      %p440 = por %p438, %p439
      %p441 = scmp.ne.s32.totalorder %s429, %s430
      %p442 = scmp.eq.s32.totalorder %s29, 1
      %p443 = por %p441, %p442
      %p445 = scmp.ne.s32.totalorder %s430, %s444
      %p446 = scmp.eq.s32.totalorder %s29, 0
      %p447 = por %p445, %p446
      %p448 = scmp.le.s32.totalorder 1, %s23
      %p449 = scmp.lt.s32.totalorder %s23, 3
      %p450 = pnand %p448, %p449
      %p451 = pneg %p450
      // Predicated region
      $region9: #{bert_forward.1} parent=5 // pred_check
        _
      $region10: #{bert_forward.1} parent=5 // pred_check_branch
        %453 = sbr.rel (%p450) target = $region12
      $region11: #{bert_forward.1} parent=5 // pred_region
        %s454 = ssub.s32 %s23, 1
        // Predicated region
        $region13: #{bert_forward.1} parent=11 // pred_check
          %p455 = pneg %p44
        $region14: #{bert_forward.1} parent=11 // pred_check_branch
          %457 = sbr.rel (%p455) target = $region16
        $region15: #{bert_forward.1} parent=11 // pred_region
          _
        $region16: #{bert_forward.1} parent=11 // pred_fallthru
          _
        // Predicated region
        $region17: #{bert_forward.1} parent=11 // pred_check
          %p458 = pneg %p65
        $region18: #{bert_forward.1} parent=11 // pred_check_branch
          %460 = sbr.rel (%p458) target = $region20
        $region19: #{bert_forward.1} parent=11 // pred_region
          _
        $region20: #{bert_forward.1} parent=11 // pred_fallthru
          _
        // Predicated region
        $region21: #{bert_forward.1} parent=11 // pred_check
          %p461 = pneg %p86
        $region22: #{bert_forward.1} parent=11 // pred_check_branch
          %463 = sbr.rel (%p461) target = $region24
        $region23: #{bert_forward.1} parent=11 // pred_region
          _
        $region24: #{bert_forward.1} parent=11 // pred_fallthru
          _
        // Predicated region
        $region25: #{bert_forward.1} parent=11 // pred_check
          %p464 = pneg %p107
        $region26: #{bert_forward.1} parent=11 // pred_check_branch
          %466 = sbr.rel (%p464) target = $region28
        $region27: #{bert_forward.1} parent=11 // pred_region
          _
        $region28: #{bert_forward.1} parent=11 // pred_fallthru
          _
      $region12: #{bert_forward.1} parent=5 // pred_fallthru
        _
      %p467 = scmp.lt.s32.totalorder %s23, 2
      // Predicated region
      $region29: #{bert_forward.1} parent=5 // pred_check
        %p468 = pneg %p467
      $region30: #{bert_forward.1} parent=5 // pred_check_branch
        %470 = sbr.rel (%p468) target = $region32
      $region31: #{bert_forward.1} parent=5 // pred_region
        // Predicated region
        $region33: #{bert_forward.1} parent=31 // pred_check
          %p471 = pneg %p127
        $region34: #{bert_forward.1} parent=31 // pred_check_branch
          %473 = sbr.rel (%p471) target = $region36
        $region35: #{bert_forward.1} parent=31 // pred_region
          %p474 = scmp.lt.s32.totalorder %s23, 1
          %s475 = scalar_select %p474, %s23, 1
          %s476 = smul.addr %s475, 4
          %s477 = smul.addr %s476, 4
          %s478 = scalar_lea.vmem %s4, %s477
        $region36: #{bert_forward.1} parent=31 // pred_fallthru
          _
        // Predicated region
        $region37: #{bert_forward.1} parent=31 // pred_check
          %p479 = pneg %p153
        $region38: #{bert_forward.1} parent=31 // pred_check_branch
          %481 = sbr.rel (%p479) target = $region40
        $region39: #{bert_forward.1} parent=31 // pred_region
          %p482 = scmp.lt.s32.totalorder %s23, 1
          %s483 = scalar_select %p482, %s23, 1
          %s484 = scalar_lea.vmem %s5, %s483
        $region40: #{bert_forward.1} parent=31 // pred_fallthru
          _
        // Predicated region
        $region41: #{bert_forward.1} parent=31 // pred_check
          %p485 = pneg %p179
        $region42: #{bert_forward.1} parent=31 // pred_check_branch
          %487 = sbr.rel (%p485) target = $region44
        $region43: #{bert_forward.1} parent=31 // pred_region
          %p488 = scmp.lt.s32.totalorder %s23, 1
          %s489 = scalar_select %p488, %s23, 1
          %s490 = smul.addr %s489, 4
          %s491 = smul.addr %s490, 4
          %s492 = scalar_lea.vmem %s6, %s491
        $region44: #{bert_forward.1} parent=31 // pred_fallthru
          _
        // Predicated region
        $region45: #{bert_forward.1} parent=31 // pred_check
          %p493 = pneg %p205
        $region46: #{bert_forward.1} parent=31 // pred_check_branch
          %495 = sbr.rel (%p493) target = $region48
        $region47: #{bert_forward.1} parent=31 // pred_region
          %p496 = scmp.lt.s32.totalorder %s23, 1
          %s497 = scalar_select %p496, %s23, 1
          %s498 = scalar_lea.vmem %s7, %s497
        $region48: #{bert_forward.1} parent=31 // pred_fallthru
          _
        // Predicated region
        $region49: #{bert_forward.1} parent=31 // pred_check
          %p499 = pneg %p231
        $region50: #{bert_forward.1} parent=31 // pred_check_branch
          %501 = sbr.rel (%p499) target = $region52
        $region51: #{bert_forward.1} parent=31 // pred_region
          %p502 = scmp.lt.s32.totalorder %s23, 1
          %s503 = scalar_select %p502, %s23, 1
          %s504 = scalar_lea.vmem %s8, %s503
        $region52: #{bert_forward.1} parent=31 // pred_fallthru
          _
        // Predicated region
        $region53: #{bert_forward.1} parent=31 // pred_check
          %p505 = pneg %p257
        $region54: #{bert_forward.1} parent=31 // pred_check_branch
          %507 = sbr.rel (%p505) target = $region56
        $region55: #{bert_forward.1} parent=31 // pred_region
          %p508 = scmp.lt.s32.totalorder %s23, 1
          %s509 = scalar_select %p508, %s23, 1
          %s510 = scalar_lea.vmem %s9, %s509
        $region56: #{bert_forward.1} parent=31 // pred_fallthru
          _
        // Predicated region
        $region57: #{bert_forward.1} parent=31 // pred_check
          %p511 = pneg %p283
        $region58: #{bert_forward.1} parent=31 // pred_check_branch
          %513 = sbr.rel (%p511) target = $region60
        $region59: #{bert_forward.1} parent=31 // pred_region
          %p514 = scmp.lt.s32.totalorder %s23, 1
          %s515 = scalar_select %p514, %s23, 1
          %s516 = smul.addr %s515, 4
          %s517 = smul.addr %s516, 4
          %s518 = scalar_lea.vmem %s10, %s517
        $region60: #{bert_forward.1} parent=31 // pred_fallthru
          _
        // Predicated region
        $region61: #{bert_forward.1} parent=31 // pred_check
          %p519 = pneg %p309
        $region62: #{bert_forward.1} parent=31 // pred_check_branch
          %521 = sbr.rel (%p519) target = $region64
        $region63: #{bert_forward.1} parent=31 // pred_region
          %p522 = scmp.lt.s32.totalorder %s23, 1
          %s523 = scalar_select %p522, %s23, 1
          %s524 = scalar_lea.vmem %s11, %s523
        $region64: #{bert_forward.1} parent=31 // pred_fallthru
          _
        // Predicated region
        $region65: #{bert_forward.1} parent=31 // pred_check
          %p525 = pneg %p335
        $region66: #{bert_forward.1} parent=31 // pred_check_branch
          %527 = sbr.rel (%p525) target = $region68
        $region67: #{bert_forward.1} parent=31 // pred_region
          %p528 = scmp.lt.s32.totalorder %s23, 1
          %s529 = scalar_select %p528, %s23, 1
          %s530 = smul.addr %s529, 8
          %s531 = smul.addr %s530, 4
          %s532 = scalar_lea.vmem %s12, %s531
        $region68: #{bert_forward.1} parent=31 // pred_fallthru
          _
        // Predicated region
        $region69: #{bert_forward.1} parent=31 // pred_check
          %p533 = pneg %p361
        $region70: #{bert_forward.1} parent=31 // pred_check_branch
          %535 = sbr.rel (%p533) target = $region72
        $region71: #{bert_forward.1} parent=31 // pred_region
          %p536 = scmp.lt.s32.totalorder %s23, 1
          %s537 = scalar_select %p536, %s23, 1
          %s538 = scalar_lea.vmem %s13, %s537
        $region72: #{bert_forward.1} parent=31 // pred_fallthru
          _
        // Predicated region
        $region73: #{bert_forward.1} parent=31 // pred_check
          %p539 = pneg %p387
        $region74: #{bert_forward.1} parent=31 // pred_check_branch
          %541 = sbr.rel (%p539) target = $region76
        $region75: #{bert_forward.1} parent=31 // pred_region
          %p542 = scmp.lt.s32.totalorder %s23, 1
          %s543 = scalar_select %p542, %s23, 1
          %s544 = scalar_lea.vmem %s14, %s543
        $region76: #{bert_forward.1} parent=31 // pred_fallthru
          _
        // Predicated region
        $region77: #{bert_forward.1} parent=31 // pred_check
          %p545 = pneg %p413
        $region78: #{bert_forward.1} parent=31 // pred_check_branch
          %547 = sbr.rel (%p545) target = $region80
        $region79: #{bert_forward.1} parent=31 // pred_region
          %p548 = scmp.lt.s32.totalorder %s23, 1
          %s549 = scalar_select %p548, %s23, 1
          %s550 = scalar_lea.vmem %s15, %s549
        $region80: #{bert_forward.1} parent=31 // pred_fallthru
          _
      $region32: #{bert_forward.1} parent=5 // pred_fallthru
        _
      %p551 = scmp.le.s32.totalorder 1, %s23
      %p552 = scmp.lt.s32.totalorder %s23, 3
      %p553 = pnand %p551, %p552
      %p554 = pneg %p553
      // Predicated region
      $region81: #{bert_forward.1} parent=5 // pred_check
        _
      $region82: #{bert_forward.1} parent=5 // pred_check_branch
        %556 = sbr.rel (%p553) target = $region84
      $region83: #{bert_forward.1} parent=5 // pred_region
        %s557 = ssub.s32 %s23, 1
        %p558 = pneg %p44
        %p559 = pneg %p41
        %p560 = pneg %p65
        %p561 = pneg %p62
        %p562 = pneg %p86
        %p563 = pneg %p83
        %p564 = pneg %p107
        %p565 = pneg %p104
        %p566 = scmp.lt.s32.totalorder %s28, 1
        %s567 = scalar_select %p566, %s28, 1
        %s568 = smul.addr %s567, 4
        %s569 = smul.addr %s568, 4
        %s570 = scalar_lea.vmem %s4, %s569
        %p571 = pneg %p133
        %p572 = pneg %p130
        %p573 = scmp.lt.s32.totalorder %s28, 1
        %s574 = scalar_select %p573, %s28, 1
        %s575 = scalar_lea.vmem %s5, %s574
        %p576 = pneg %p159
        %p577 = pneg %p156
        %p578 = scmp.lt.s32.totalorder %s28, 1
        %s579 = scalar_select %p578, %s28, 1
        %s580 = smul.addr %s579, 4
        %s581 = smul.addr %s580, 4
        %s582 = scalar_lea.vmem %s6, %s581
        %p583 = pneg %p185
        %p584 = pneg %p182
        %p585 = scmp.lt.s32.totalorder %s28, 1
        %s586 = scalar_select %p585, %s28, 1
        %s587 = scalar_lea.vmem %s7, %s586
        %p588 = pneg %p211
        %p589 = pneg %p208
        %p590 = scmp.lt.s32.totalorder %s28, 1
        %s591 = scalar_select %p590, %s28, 1
        %s592 = scalar_lea.vmem %s8, %s591
        %p593 = pneg %p237
        %p594 = pneg %p234
        %p595 = scmp.lt.s32.totalorder %s28, 1
        %s596 = scalar_select %p595, %s28, 1
        %s597 = scalar_lea.vmem %s9, %s596
        %p598 = pneg %p263
        %p599 = pneg %p260
        %p600 = scmp.lt.s32.totalorder %s28, 1
        %s601 = scalar_select %p600, %s28, 1
        %s602 = smul.addr %s601, 4
        %s603 = smul.addr %s602, 4
        %s604 = scalar_lea.vmem %s10, %s603
        %p605 = pneg %p289
        %p606 = pneg %p286
        %p607 = scmp.lt.s32.totalorder %s28, 1
        %s608 = scalar_select %p607, %s28, 1
        %s609 = scalar_lea.vmem %s11, %s608
        %p610 = pneg %p315
        %p611 = pneg %p312
        %p612 = scmp.lt.s32.totalorder %s28, 1
        %s613 = scalar_select %p612, %s28, 1
        %s614 = smul.addr %s613, 8
        %s615 = smul.addr %s614, 4
        %s616 = scalar_lea.vmem %s12, %s615
        %p617 = pneg %p341
        %p618 = pneg %p338
        %p619 = scmp.lt.s32.totalorder %s28, 1
        %s620 = scalar_select %p619, %s28, 1
        %s621 = scalar_lea.vmem %s13, %s620
        %p622 = pneg %p367
        %p623 = pneg %p364
        %p624 = scmp.lt.s32.totalorder %s28, 1
        %s625 = scalar_select %p624, %s28, 1
        %s626 = scalar_lea.vmem %s14, %s625
        %p627 = pneg %p393
        %p628 = pneg %p390
        %p629 = scmp.lt.s32.totalorder %s28, 1
        %s630 = scalar_select %p629, %s28, 1
        %s631 = scalar_lea.vmem %s15, %s630
        %p632 = pneg %p419
        %p633 = pneg %p416
        %p634 = pneg %p440
        %p635 = pneg %p437
        %p636 = scmp.lt.s32.totalorder %s28, 1
        %s637 = scalar_select %p636, %s28, 1
        %s638 = smul.addr %s637, 4
        %s639 = smul.addr %s638, 4
        %s640 = scalar_lea.vmem %s4, %s639
        %p641 = scmp.lt.s32.totalorder %s28, 1
        %s642 = scalar_select %p641, %s28, 1
        %s643 = scalar_lea.vmem %s5, %s642
        %p644 = scmp.lt.s32.totalorder %s28, 1
        %s645 = scalar_select %p644, %s28, 1
        %s646 = smul.addr %s645, 4
        %s647 = smul.addr %s646, 4
        %s648 = scalar_lea.vmem %s6, %s647
        %p649 = scmp.lt.s32.totalorder %s28, 1
        %s650 = scalar_select %p649, %s28, 1
        %s651 = scalar_lea.vmem %s7, %s650
        %p652 = scmp.lt.s32.totalorder %s28, 1
        %s653 = scalar_select %p652, %s28, 1
        %s654 = scalar_lea.vmem %s8, %s653
        %p655 = scmp.lt.s32.totalorder %s28, 1
        %s656 = scalar_select %p655, %s28, 1
        %s657 = scalar_lea.vmem %s9, %s656
        %p658 = scmp.lt.s32.totalorder %s28, 1
        %s659 = scalar_select %p658, %s28, 1
        %s660 = smul.addr %s659, 4
        %s661 = smul.addr %s660, 4
        %s662 = scalar_lea.vmem %s10, %s661
        %p663 = scmp.lt.s32.totalorder %s28, 1
        %s664 = scalar_select %p663, %s28, 1
        %s665 = scalar_lea.vmem %s11, %s664
        %p666 = scmp.lt.s32.totalorder %s28, 1
        %s667 = scalar_select %p666, %s28, 1
        %s668 = smul.addr %s667, 8
        %s669 = smul.addr %s668, 4
        %s670 = scalar_lea.vmem %s12, %s669
        %p671 = scmp.lt.s32.totalorder %s28, 1
        %s672 = scalar_select %p671, %s28, 1
        %s673 = scalar_lea.vmem %s13, %s672
        %p674 = scmp.lt.s32.totalorder %s28, 1
        %s675 = scalar_select %p674, %s28, 1
        %s676 = scalar_lea.vmem %s14, %s675
        %p677 = scmp.lt.s32.totalorder %s28, 1
        %s678 = scalar_select %p677, %s28, 1
        %s679 = scalar_lea.vmem %s15, %s678
        %p681 = scmp.eq.s32.totalorder %s28, 0
        // Predicated region
        $region85: #{bert_forward.1} parent=83 // pred_check
          %p682 = pneg %p681
        $region86: #{bert_forward.1} parent=83 // pred_check_branch
          %684 = sbr.rel (%p682) target = $region88
        $region87: #{bert_forward.1} parent=83 // pred_region
          %v685 = vld [vmem:[%s0] sm:$0xff]
          %v686 = vld [vmem:[%s0 + $0x8] sm:$0xff]
          %v687 = vld [vmem:[%s2] sm:$0x1]
          %v688 = vld [vmem:[%s3] sm:$0x1]
          %vm689 = vcmask 261120
          %v690 = vsel %vm689, %v685, 0.0
          %691 = vadd.xlane.f32.xlu0 %v690
          %v692 = vpop.xlane.xlu0 %691
          %v693 = vsel %vm689, %v686, 0.0
          %694 = vadd.xlane.f32.xlu0 %v693
          %v695 = vpop.xlane.xlu0 %694
          %v696 = vrcp.pop 32.0
          %v697 = vmul.f32 %v692, %v696
          %v698 = vmul.f32 %v695, %v696
          %v699 = vsub.f32 %v685, %v697
          %v700 = vsub.f32 %v686, %v698
          %v701 = vmul.f32 %v699, %v699
          %v702 = vmul.f32 %v700, %v700
          %v703 = vsel %vm689, %v701, 0.0
          %704 = vadd.xlane.f32.xlu0 %v703
          %v705 = vpop.xlane.xlu0 %704
          %v706 = vsel %vm689, %v702, 0.0
          %707 = vadd.xlane.f32.xlu0 %v706
          %v708 = vpop.xlane.xlu0 %707
          %v709 = vmul.f32 %v705, %v696
          %v710 = vmul.f32 %v708, %v696
          %v711 = vadd.f32 %v709, 1e-12
          %v712 = vadd.f32 %v710, 1e-12
          %v713 = vrsqrt.pop %v711
          %v714 = vrsqrt.pop %v712
          %v715 = vmul.f32 %v699, %v713
          %v716 = vmul.f32 %v700, %v714
          %v718 = vlaneseq
          %v719 = vshrl.u32 %v718, 7
          %v720 = vsub.s32 0, %v719
          %v721 = vrot.slane %v687, %v720
          %v723 = vmul.f32 %v715, %v721
          %v724 = vmul.f32 %v716, %v721
          %v726 = vlaneseq
          %v727 = vshrl.u32 %v726, 7
          %v728 = vsub.s32 0, %v727
          %v729 = vrot.slane %v688, %v728
          %v731 = vadd.f32 %v723, %v729
          %v732 = vadd.f32 %v724, %v729
          %733 = vst.msk [vmem:[#allocation2] sm:$0xff] %vm689, %v731
          %734 = vst.msk [vmem:[#allocation2 + $0x8] sm:$0xff] %vm689, %v732
        $region88: #{bert_forward.1} parent=83 // pred_fallthru
          _
        %v735 = vld [vmem:[#allocation2] sm:$0xff]
        %v736 = vld [vmem:[#allocation2 + $0x8] sm:$0xff]
        %v737 = vpack.c.bf16 %v736, %v735
        %v738 = vld [vmem:[%s640] sm:$0xf]
        %v739 = vld [vmem:[%s640 + $0x4] sm:$0xf]
        %v740 = vld [vmem:[%s640 + $0x8] sm:$0xf]
        %v741 = vld [vmem:[%s640 + $0xc] sm:$0xf]
        %v742 = vld [vmem:[%s643] sm:$0x1]
        %v744 = vlaneseq
        %v745 = vshrl.u32 %v744, 7
        %v746 = vsub.s32 0, %v745
        %v747 = vrot.slane %v742, %v746
        %v753 = vunpack.c.l.b16 %v738
        %v754 = vunpack.c.l.b16 %v739
        %v755 = vunpack.c.l.b16 %v740
        %v756 = vunpack.c.l.b16 %v741
        %v757 = vpack.c.b16 %v754, %v753
        %v758 = vpack.c.b16 %v756, %v755
        %vm761 = vcmask 261120
        %v763 = vsel %vm761, %v737, 0
        %765 = vmatprep.subr.bf16.mxu0 0
        %766 = vmatpush1.bf16.msra.mxu0 %v757
        %767 = vmatprep.subr.bf16.mxu0 0
        %768 = vmatpush1.bf16.msra.mxu0 %v758
        %769 = vmatprep.subr.bf16.mxu0 0
        %770 = vmatpush1.bf16.msra.mxu0 0
        %771 = vmatprep.subr.bf16.mxu0 0
        %772 = vmatpush1.bf16.msra.mxu0 0
        %773 = vmatprep.subr.bf16.mxu0 0
        %774 = vmatpush1.bf16.msra.mxu0 0
        %775 = vmatprep.subr.bf16.mxu0 0
        %776 = vmatpush1.bf16.msra.mxu0 0
        %777 = vmatprep.subr.bf16.mxu0 0
        %778 = vmatpush1.bf16.msra.mxu0 0
        %779 = vmatprep.subr.bf16.mxu0 0
        %780 = vmatpush1.bf16.msra.mxu0 0
        %781 = vmatprep.subr.bf16.mxu0 0
        %782 = vmatpush1.bf16.msra.mxu0 0
        %783 = vmatprep.subr.bf16.mxu0 0
        %784 = vmatpush1.bf16.msra.mxu0 0
        %785 = vmatprep.subr.bf16.mxu0 0
        %786 = vmatpush1.bf16.msra.mxu0 0
        %787 = vmatprep.subr.bf16.mxu0 0
        %788 = vmatpush1.bf16.msra.mxu0 0
        %789 = vmatprep.subr.bf16.mxu0 0
        %790 = vmatpush1.bf16.msra.mxu0 0
        %791 = vmatprep.subr.bf16.mxu0 0
        %792 = vmatpush1.bf16.msra.mxu0 0
        %793 = vmatprep.subr.bf16.mxu0 0
        %794 = vmatpush1.bf16.msra.mxu0 0
        %795 = vmatprep.subr.bf16.mxu0 0
        %796 = vmatpush1.bf16.msra.mxu0 0
        %797 = vmatprep.mubr.bf16.mxu0 0
        %798 = vmatmul.mubr.bf16.gmra.mrb[0].mxu0 %v763
        %v799 = vpop.f32.mrb[0].mxu0
        %v800 = vadd.f32 %v747, %v799
        %v801 = vpop.f32.mrb[0].mxu0
        %v802 = vpop.f32.mrb[0].mxu0
        %v803 = vadd.f32 %v747, %v802
        %v804 = vpop.f32.mrb[0].mxu0
        %805 = vdwg.mxu0
        %v806 = vpack.c.bf16 %v803, %v800
        %v807 = vld [vmem:[%s1] sm:$0xff]
        %v808 = vld [vmem:[%s1 + $0x8] sm:$0xff]
        %810 = vrot.lane.b32.xlu0 %v806, 96
        %v811 = vpop.permute.xlu0 %810
        %vm812 = vcmask 64512
        %v814 = vsel %vm812, %v806, 0
        %v817 = vsel %vm812, %v811, 0
        %819 = vmatprep.subr.bf16.mxu0 0
        %820 = vmatpush1.bf16.xpose.msra.mxu0 %v817
        %821 = vmatprep.subr.bf16.mxu0 0
        %822 = vmatpush1.bf16.xpose.msra.mxu0 0
        %823 = vmatprep.subr.bf16.mxu0 0
        %824 = vmatpush1.bf16.xpose.msra.mxu0 0
        %825 = vmatprep.subr.bf16.mxu0 0
        %826 = vmatpush1.bf16.xpose.msra.mxu0 0
        %827 = vmatprep.subr.bf16.mxu0 0
        %828 = vmatpush1.bf16.xpose.msra.mxu0 0
        %829 = vmatprep.subr.bf16.mxu0 0
        %830 = vmatpush1.bf16.xpose.msra.mxu0 0
        %831 = vmatprep.subr.bf16.mxu0 0
        %832 = vmatpush1.bf16.xpose.msra.mxu0 0
        %833 = vmatprep.subr.bf16.mxu0 0
        %834 = vmatpush1.bf16.xpose.msra.mxu0 0
        %835 = vmatprep.subr.bf16.mxu0 0
        %836 = vmatpush1.bf16.xpose.msra.mxu0 0
        %837 = vmatprep.subr.bf16.mxu0 0
        %838 = vmatpush1.bf16.xpose.msra.mxu0 0
        %839 = vmatprep.subr.bf16.mxu0 0
        %840 = vmatpush1.bf16.xpose.msra.mxu0 0
        %841 = vmatprep.subr.bf16.mxu0 0
        %842 = vmatpush1.bf16.xpose.msra.mxu0 0
        %843 = vmatprep.subr.bf16.mxu0 0
        %844 = vmatpush1.bf16.xpose.msra.mxu0 0
        %845 = vmatprep.subr.bf16.mxu0 0
        %846 = vmatpush1.bf16.xpose.msra.mxu0 0
        %847 = vmatprep.subr.bf16.mxu0 0
        %848 = vmatpush1.bf16.xpose.msra.mxu0 0
        %849 = vmatprep.subr.bf16.mxu0 0
        %850 = vmatpush1.bf16.xpose.msra.mxu0 0
        %851 = vmatprep.mubr.bf16.mxu0 0
        %852 = vmatmul.mubr.bf16.gmra.mrb[0].mxu0 %v814
        %v853 = vpop.f32.mrb[0].mxu0
        %v854 = vadd.f32 0.0, %v853
        %v855 = vpop.f32.mrb[0].mxu0
        %v856 = vpop.f32.mrb[0].mxu0
        %v857 = vadd.f32 0.0, %v856
        %v858 = vpop.f32.mrb[0].mxu0
        %859 = vdwg.mxu0
        %v860 = vmul.f32 %v854, 0.35355338
        %v861 = vmul.f32 %v857, 0.35355338
        %v862 = vadd.f32 %v860, %v807
        %v863 = vadd.f32 %v861, %v808
        %vm864 = vcmask 130048
        %v865 = vsel %vm864, %v862, -inf
        %866 = vmax.xlane.f32.xlu0 %v865
        %v867 = vpop.xlane.xlu0 %866
        %v868 = vsel %vm864, %v863, -inf
        %869 = vmax.xlane.f32.xlu0 %v868
        %v870 = vpop.xlane.xlu0 %869
        %v871 = vsub.f32 %v862, %v867
        %v872 = vsub.f32 %v863, %v870
        %v873 = vmul.f32 %v871, 1.442695
        %v874 = vpow.pop %v873
        %v875 = vmul.f32 %v872, 1.442695
        %v876 = vpow.pop %v875
        %v877 = vsel %vm864, %v874, 0.0
        %878 = vadd.xlane.f32.xlu0 %v877
        %v879 = vpop.xlane.xlu0 %878
        %v880 = vsel %vm864, %v876, 0.0
        %881 = vadd.xlane.f32.xlu0 %v880
        %v882 = vpop.xlane.xlu0 %881
        %v883 = vrcp.pop %v879
        %v884 = vmul.f32 %v874, %v883
        %v885 = vrcp.pop %v882
        %v886 = vmul.f32 %v876, %v885
        %v887 = vpack.c.bf16 %v886, %v884
        %888 = vrot.lane.b32.xlu0 %v806, 64
        %v889 = vpop.permute.xlu0 %888
        %v892 = vsel %vm864, %v887, 0
        %894 = vmatprep.subr.bf16.mxu0 0
        %895 = vmatpush1.bf16.msra.mxu0 %v889
        %896 = vmatprep.subr.bf16.mxu0 0
        %897 = vmatpush1.bf16.msra.mxu0 0
        %898 = vmatprep.subr.bf16.mxu0 0
        %899 = vmatpush1.bf16.msra.mxu0 0
        %900 = vmatprep.subr.bf16.mxu0 0
        %901 = vmatpush1.bf16.msra.mxu0 0
        %902 = vmatprep.subr.bf16.mxu0 0
        %903 = vmatpush1.bf16.msra.mxu0 0
        %904 = vmatprep.subr.bf16.mxu0 0
        %905 = vmatpush1.bf16.msra.mxu0 0
        %906 = vmatprep.subr.bf16.mxu0 0
        %907 = vmatpush1.bf16.msra.mxu0 0
        %908 = vmatprep.subr.bf16.mxu0 0
        %909 = vmatpush1.bf16.msra.mxu0 0
        %910 = vmatprep.subr.bf16.mxu0 0
        %911 = vmatpush1.bf16.msra.mxu0 0
        %912 = vmatprep.subr.bf16.mxu0 0
        %913 = vmatpush1.bf16.msra.mxu0 0
        %914 = vmatprep.subr.bf16.mxu0 0
        %915 = vmatpush1.bf16.msra.mxu0 0
        %916 = vmatprep.subr.bf16.mxu0 0
        %917 = vmatpush1.bf16.msra.mxu0 0
        %918 = vmatprep.subr.bf16.mxu0 0
        %919 = vmatpush1.bf16.msra.mxu0 0
        %920 = vmatprep.subr.bf16.mxu0 0
        %921 = vmatpush1.bf16.msra.mxu0 0
        %922 = vmatprep.subr.bf16.mxu0 0
        %923 = vmatpush1.bf16.msra.mxu0 0
        %924 = vmatprep.subr.bf16.mxu0 0
        %925 = vmatpush1.bf16.msra.mxu0 0
        %926 = vmatprep.mubr.bf16.mxu0 0
        %927 = vmatmul.mubr.bf16.gmra.mrb[0].mxu0 %v892
        %v928 = vpop.f32.mrb[0].mxu0
        %v929 = vadd.f32 0.0, %v928
        %v930 = vpop.f32.mrb[0].mxu0
        %v931 = vpop.f32.mrb[0].mxu0
        %v932 = vadd.f32 0.0, %v931
        %v933 = vpop.f32.mrb[0].mxu0
        %934 = vdwg.mxu0
        %935 = vrot.lane.b32.xlu0 %v806, 120
        %v936 = vpop.permute.xlu0 %935
        %937 = vrot.lane.b32.xlu0 %v806, 88
        %v938 = vpop.permute.xlu0 %937
        %v940 = vsel %vm812, %v936, 0
        %v943 = vsel %vm812, %v938, 0
        %945 = vmatprep.subr.bf16.mxu0 0
        %946 = vmatpush1.bf16.xpose.msra.mxu0 %v943
        %947 = vmatprep.subr.bf16.mxu0 0
        %948 = vmatpush1.bf16.xpose.msra.mxu0 0
        %949 = vmatprep.subr.bf16.mxu0 0
        %950 = vmatpush1.bf16.xpose.msra.mxu0 0
        %951 = vmatprep.subr.bf16.mxu0 0
        %952 = vmatpush1.bf16.xpose.msra.mxu0 0
        %953 = vmatprep.subr.bf16.mxu0 0
        %954 = vmatpush1.bf16.xpose.msra.mxu0 0
        %955 = vmatprep.subr.bf16.mxu0 0
        %956 = vmatpush1.bf16.xpose.msra.mxu0 0
        %957 = vmatprep.subr.bf16.mxu0 0
        %958 = vmatpush1.bf16.xpose.msra.mxu0 0
        %959 = vmatprep.subr.bf16.mxu0 0
        %960 = vmatpush1.bf16.xpose.msra.mxu0 0
        %961 = vmatprep.subr.bf16.mxu0 0
        %962 = vmatpush1.bf16.xpose.msra.mxu0 0
        %963 = vmatprep.subr.bf16.mxu0 0
        %964 = vmatpush1.bf16.xpose.msra.mxu0 0
        %965 = vmatprep.subr.bf16.mxu0 0
        %966 = vmatpush1.bf16.xpose.msra.mxu0 0
        %967 = vmatprep.subr.bf16.mxu0 0
        %968 = vmatpush1.bf16.xpose.msra.mxu0 0
        %969 = vmatprep.subr.bf16.mxu0 0
        %970 = vmatpush1.bf16.xpose.msra.mxu0 0
        %971 = vmatprep.subr.bf16.mxu0 0
        %972 = vmatpush1.bf16.xpose.msra.mxu0 0
        %973 = vmatprep.subr.bf16.mxu0 0
        %974 = vmatpush1.bf16.xpose.msra.mxu0 0
        %975 = vmatprep.subr.bf16.mxu0 0
        %976 = vmatpush1.bf16.xpose.msra.mxu0 0
        %977 = vmatprep.mubr.bf16.mxu0 0
        %978 = vmatmul.mubr.bf16.gmra.mrb[0].mxu0 %v940
        %v979 = vpop.f32.mrb[0].mxu0
        %v980 = vadd.f32 0.0, %v979
        %v981 = vpop.f32.mrb[0].mxu0
        %v982 = vpop.f32.mrb[0].mxu0
        %v983 = vadd.f32 0.0, %v982
        %v984 = vpop.f32.mrb[0].mxu0
        %985 = vdwg.mxu0
        %v986 = vmul.f32 %v980, 0.35355338
        %v987 = vmul.f32 %v983, 0.35355338
        %v988 = vadd.f32 %v986, %v807
        %v989 = vadd.f32 %v987, %v808
        %v990 = vsel %vm864, %v988, -inf
        %991 = vmax.xlane.f32.xlu0 %v990
        %v992 = vpop.xlane.xlu0 %991
        %v993 = vsel %vm864, %v989, -inf
        %994 = vmax.xlane.f32.xlu0 %v993
        %v995 = vpop.xlane.xlu0 %994
        %v996 = vsub.f32 %v988, %v992
        %v997 = vsub.f32 %v989, %v995
        %v998 = vmul.f32 %v996, 1.442695
        %v999 = vpow.pop %v998
        %v1000 = vmul.f32 %v997, 1.442695
        %v1001 = vpow.pop %v1000
        %v1002 = vsel %vm864, %v999, 0.0
        %1003 = vadd.xlane.f32.xlu0 %v1002
        %v1004 = vpop.xlane.xlu0 %1003
        %v1005 = vsel %vm864, %v1001, 0.0
        %1006 = vadd.xlane.f32.xlu0 %v1005
        %v1007 = vpop.xlane.xlu0 %1006
        %v1008 = vrcp.pop %v1004
        %v1009 = vmul.f32 %v999, %v1008
        %v1010 = vrcp.pop %v1007
        %v1011 = vmul.f32 %v1001, %v1010
        %v1012 = vpack.c.bf16 %v1011, %v1009
        %1013 = vrot.lane.b32.xlu0 %v806, 56
        %v1014 = vpop.permute.xlu0 %1013
        %v1017 = vsel %vm864, %v1012, 0
        %1019 = vmatprep.subr.bf16.mxu0 0
        %1020 = vmatpush1.bf16.msra.mxu0 %v1014
        %1021 = vmatprep.subr.bf16.mxu0 0
        %1022 = vmatpush1.bf16.msra.mxu0 0
        %1023 = vmatprep.subr.bf16.mxu0 0
        %1024 = vmatpush1.bf16.msra.mxu0 0
        %1025 = vmatprep.subr.bf16.mxu0 0
        %1026 = vmatpush1.bf16.msra.mxu0 0
        %1027 = vmatprep.subr.bf16.mxu0 0
        %1028 = vmatpush1.bf16.msra.mxu0 0
        %1029 = vmatprep.subr.bf16.mxu0 0
        %1030 = vmatpush1.bf16.msra.mxu0 0
        %1031 = vmatprep.subr.bf16.mxu0 0
        %1032 = vmatpush1.bf16.msra.mxu0 0
        %1033 = vmatprep.subr.bf16.mxu0 0
        %1034 = vmatpush1.bf16.msra.mxu0 0
        %1035 = vmatprep.subr.bf16.mxu0 0
        %1036 = vmatpush1.bf16.msra.mxu0 0
        %1037 = vmatprep.subr.bf16.mxu0 0
        %1038 = vmatpush1.bf16.msra.mxu0 0
        %1039 = vmatprep.subr.bf16.mxu0 0
        %1040 = vmatpush1.bf16.msra.mxu0 0
        %1041 = vmatprep.subr.bf16.mxu0 0
        %1042 = vmatpush1.bf16.msra.mxu0 0
        %1043 = vmatprep.subr.bf16.mxu0 0
        %1044 = vmatpush1.bf16.msra.mxu0 0
        %1045 = vmatprep.subr.bf16.mxu0 0
        %1046 = vmatpush1.bf16.msra.mxu0 0
        %1047 = vmatprep.subr.bf16.mxu0 0
        %1048 = vmatpush1.bf16.msra.mxu0 0
        %1049 = vmatprep.subr.bf16.mxu0 0
        %1050 = vmatpush1.bf16.msra.mxu0 0
        %1051 = vmatprep.mubr.bf16.mxu0 0
        %1052 = vmatmul.mubr.bf16.gmra.mrb[0].mxu0 %v1017
        %v1053 = vpop.f32.mrb[0].mxu0
        %v1054 = vadd.f32 0.0, %v1053
        %v1055 = vpop.f32.mrb[0].mxu0
        %v1056 = vpop.f32.mrb[0].mxu0
        %v1057 = vadd.f32 0.0, %v1056
        %v1058 = vpop.f32.mrb[0].mxu0
        %1059 = vdwg.mxu0
        %1060 = vrot.lane.b32.xlu0 %v806, 112
        %v1061 = vpop.permute.xlu0 %1060
        %1062 = vrot.lane.b32.xlu0 %v806, 80
        %v1063 = vpop.permute.xlu0 %1062
        %v1065 = vsel %vm812, %v1061, 0
        %v1068 = vsel %vm812, %v1063, 0
        %1070 = vmatprep.subr.bf16.mxu0 0
        %1071 = vmatpush1.bf16.xpose.msra.mxu0 %v1068
        %1072 = vmatprep.subr.bf16.mxu0 0
        %1073 = vmatpush1.bf16.xpose.msra.mxu0 0
        %1074 = vmatprep.subr.bf16.mxu0 0
        %1075 = vmatpush1.bf16.xpose.msra.mxu0 0
        %1076 = vmatprep.subr.bf16.mxu0 0
        %1077 = vmatpush1.bf16.xpose.msra.mxu0 0
        %1078 = vmatprep.subr.bf16.mxu0 0
        %1079 = vmatpush1.bf16.xpose.msra.mxu0 0
        %1080 = vmatprep.subr.bf16.mxu0 0
        %1081 = vmatpush1.bf16.xpose.msra.mxu0 0
        %1082 = vmatprep.subr.bf16.mxu0 0
        %1083 = vmatpush1.bf16.xpose.msra.mxu0 0
        %1084 = vmatprep.subr.bf16.mxu0 0
        %1085 = vmatpush1.bf16.xpose.msra.mxu0 0
        %1086 = vmatprep.subr.bf16.mxu0 0
        %1087 = vmatpush1.bf16.xpose.msra.mxu0 0
        %1088 = vmatprep.subr.bf16.mxu0 0
        %1089 = vmatpush1.bf16.xpose.msra.mxu0 0
        %1090 = vmatprep.subr.bf16.mxu0 0
        %1091 = vmatpush1.bf16.xpose.msra.mxu0 0
        %1092 = vmatprep.subr.bf16.mxu0 0
        %1093 = vmatpush1.bf16.xpose.msra.mxu0 0
        %1094 = vmatprep.subr.bf16.mxu0 0
        %1095 = vmatpush1.bf16.xpose.msra.mxu0 0
        %1096 = vmatprep.subr.bf16.mxu0 0
        %1097 = vmatpush1.bf16.xpose.msra.mxu0 0
        %1098 = vmatprep.subr.bf16.mxu0 0
        %1099 = vmatpush1.bf16.xpose.msra.mxu0 0
        %1100 = vmatprep.subr.bf16.mxu0 0
        %1101 = vmatpush1.bf16.xpose.msra.mxu0 0
        %1102 = vmatprep.mubr.bf16.mxu0 0
        %1103 = vmatmul.mubr.bf16.gmra.mrb[0].mxu0 %v1065
        %v1104 = vpop.f32.mrb[0].mxu0
        %v1105 = vadd.f32 0.0, %v1104
        %v1106 = vpop.f32.mrb[0].mxu0
        %v1107 = vpop.f32.mrb[0].mxu0
        %v1108 = vadd.f32 0.0, %v1107
        %v1109 = vpop.f32.mrb[0].mxu0
        %1110 = vdwg.mxu0
        %v1111 = vmul.f32 %v1105, 0.35355338
        %v1112 = vmul.f32 %v1108, 0.35355338
        %v1113 = vadd.f32 %v1111, %v807
        %v1114 = vadd.f32 %v1112, %v808
        %v1115 = vsel %vm864, %v1113, -inf
        %1116 = vmax.xlane.f32.xlu0 %v1115
        %v1117 = vpop.xlane.xlu0 %1116
        %v1118 = vsel %vm864, %v1114, -inf
        %1119 = vmax.xlane.f32.xlu0 %v1118
        %v1120 = vpop.xlane.xlu0 %1119
        %v1121 = vsub.f32 %v1113, %v1117
        %v1122 = vsub.f32 %v1114, %v1120
        %v1123 = vmul.f32 %v1121, 1.442695
        %v1124 = vpow.pop %v1123
        %v1125 = vmul.f32 %v1122, 1.442695
        %v1126 = vpow.pop %v1125
        %v1127 = vsel %vm864, %v1124, 0.0
        %1128 = vadd.xlane.f32.xlu0 %v1127
        %v1129 = vpop.xlane.xlu0 %1128
        %v1130 = vsel %vm864, %v1126, 0.0
        %1131 = vadd.xlane.f32.xlu0 %v1130
        %v1132 = vpop.xlane.xlu0 %1131
        %v1133 = vrcp.pop %v1129
        %v1134 = vmul.f32 %v1124, %v1133
        %v1135 = vrcp.pop %v1132
        %v1136 = vmul.f32 %v1126, %v1135
        %v1137 = vpack.c.bf16 %v1136, %v1134
        %1138 = vrot.lane.b32.xlu0 %v806, 48
        %v1139 = vpop.permute.xlu0 %1138
        %v1142 = vsel %vm864, %v1137, 0
        %1144 = vmatprep.subr.bf16.mxu0 0
        %1145 = vmatpush1.bf16.msra.mxu0 %v1139
        %1146 = vmatprep.subr.bf16.mxu0 0
        %1147 = vmatpush1.bf16.msra.mxu0 0
        %1148 = vmatprep.subr.bf16.mxu0 0
        %1149 = vmatpush1.bf16.msra.mxu0 0
        %1150 = vmatprep.subr.bf16.mxu0 0
        %1151 = vmatpush1.bf16.msra.mxu0 0
        %1152 = vmatprep.subr.bf16.mxu0 0
        %1153 = vmatpush1.bf16.msra.mxu0 0
        %1154 = vmatprep.subr.bf16.mxu0 0
        %1155 = vmatpush1.bf16.msra.mxu0 0
        %1156 = vmatprep.subr.bf16.mxu0 0
        %1157 = vmatpush1.bf16.msra.mxu0 0
        %1158 = vmatprep.subr.bf16.mxu0 0
        %1159 = vmatpush1.bf16.msra.mxu0 0
        %1160 = vmatprep.subr.bf16.mxu0 0
        %1161 = vmatpush1.bf16.msra.mxu0 0
        %1162 = vmatprep.subr.bf16.mxu0 0
        %1163 = vmatpush1.bf16.msra.mxu0 0
        %1164 = vmatprep.subr.bf16.mxu0 0
        %1165 = vmatpush1.bf16.msra.mxu0 0
        %1166 = vmatprep.subr.bf16.mxu0 0
        %1167 = vmatpush1.bf16.msra.mxu0 0
        %1168 = vmatprep.subr.bf16.mxu0 0
        %1169 = vmatpush1.bf16.msra.mxu0 0
        %1170 = vmatprep.subr.bf16.mxu0 0
        %1171 = vmatpush1.bf16.msra.mxu0 0
        %1172 = vmatprep.subr.bf16.mxu0 0
        %1173 = vmatpush1.bf16.msra.mxu0 0
        %1174 = vmatprep.subr.bf16.mxu0 0
        %1175 = vmatpush1.bf16.msra.mxu0 0
        %1176 = vmatprep.mubr.bf16.mxu0 0
        %1177 = vmatmul.mubr.bf16.gmra.mrb[0].mxu0 %v1142
        %v1178 = vpop.f32.mrb[0].mxu0
        %v1179 = vadd.f32 0.0, %v1178
        %v1180 = vpop.f32.mrb[0].mxu0
        %v1181 = vpop.f32.mrb[0].mxu0
        %v1182 = vadd.f32 0.0, %v1181
        %v1183 = vpop.f32.mrb[0].mxu0
        %1184 = vdwg.mxu0
        %1185 = vrot.lane.b32.xlu0 %v806, 104
        %v1186 = vpop.permute.xlu0 %1185
        %1187 = vrot.lane.b32.xlu0 %v806, 72
        %v1188 = vpop.permute.xlu0 %1187
        %v1190 = vsel %vm812, %v1186, 0
        %v1193 = vsel %vm812, %v1188, 0
        %1195 = vmatprep.subr.bf16.mxu0 0
        %1196 = vmatpush1.bf16.xpose.msra.mxu0 %v1193
        %1197 = vmatprep.subr.bf16.mxu0 0
        %1198 = vmatpush1.bf16.xpose.msra.mxu0 0
        %1199 = vmatprep.subr.bf16.mxu0 0
        %1200 = vmatpush1.bf16.xpose.msra.mxu0 0
        %1201 = vmatprep.subr.bf16.mxu0 0
        %1202 = vmatpush1.bf16.xpose.msra.mxu0 0
        %1203 = vmatprep.subr.bf16.mxu0 0
        %1204 = vmatpush1.bf16.xpose.msra.mxu0 0
        %1205 = vmatprep.subr.bf16.mxu0 0
        %1206 = vmatpush1.bf16.xpose.msra.mxu0 0
        %1207 = vmatprep.subr.bf16.mxu0 0
        %1208 = vmatpush1.bf16.xpose.msra.mxu0 0
        %1209 = vmatprep.subr.bf16.mxu0 0
        %1210 = vmatpush1.bf16.xpose.msra.mxu0 0
        %1211 = vmatprep.subr.bf16.mxu0 0
        %1212 = vmatpush1.bf16.xpose.msra.mxu0 0
        %1213 = vmatprep.subr.bf16.mxu0 0
        %1214 = vmatpush1.bf16.xpose.msra.mxu0 0
        %1215 = vmatprep.subr.bf16.mxu0 0
        %1216 = vmatpush1.bf16.xpose.msra.mxu0 0
        %1217 = vmatprep.subr.bf16.mxu0 0
        %1218 = vmatpush1.bf16.xpose.msra.mxu0 0
        %1219 = vmatprep.subr.bf16.mxu0 0
        %1220 = vmatpush1.bf16.xpose.msra.mxu0 0
        %1221 = vmatprep.subr.bf16.mxu0 0
        %1222 = vmatpush1.bf16.xpose.msra.mxu0 0
        %1223 = vmatprep.subr.bf16.mxu0 0
        %1224 = vmatpush1.bf16.xpose.msra.mxu0 0
        %1225 = vmatprep.subr.bf16.mxu0 0
        %1226 = vmatpush1.bf16.xpose.msra.mxu0 0
        %1227 = vmatprep.mubr.bf16.mxu0 0
        %1228 = vmatmul.mubr.bf16.gmra.mrb[0].mxu0 %v1190
        %v1229 = vpop.f32.mrb[0].mxu0
        %v1230 = vadd.f32 0.0, %v1229
        %v1231 = vpop.f32.mrb[0].mxu0
        %v1232 = vpop.f32.mrb[0].mxu0
        %v1233 = vadd.f32 0.0, %v1232
        %v1234 = vpop.f32.mrb[0].mxu0
        %1235 = vdwg.mxu0
        %v1236 = vmul.f32 %v1230, 0.35355338
        %v1237 = vmul.f32 %v1233, 0.35355338
        %v1238 = vadd.f32 %v1236, %v807
        %v1239 = vadd.f32 %v1237, %v808
        %v1240 = vsel %vm864, %v1238, -inf
        %1241 = vmax.xlane.f32.xlu0 %v1240
        %v1242 = vpop.xlane.xlu0 %1241
        %v1243 = vsel %vm864, %v1239, -inf
        %1244 = vmax.xlane.f32.xlu0 %v1243
        %v1245 = vpop.xlane.xlu0 %1244
        %v1246 = vsub.f32 %v1238, %v1242
        %v1247 = vsub.f32 %v1239, %v1245
        %v1248 = vmul.f32 %v1246, 1.442695
        %v1249 = vpow.pop %v1248
        %v1250 = vmul.f32 %v1247, 1.442695
        %v1251 = vpow.pop %v1250
        %v1252 = vsel %vm864, %v1249, 0.0
        %1253 = vadd.xlane.f32.xlu0 %v1252
        %v1254 = vpop.xlane.xlu0 %1253
        %v1255 = vsel %vm864, %v1251, 0.0
        %1256 = vadd.xlane.f32.xlu0 %v1255
        %v1257 = vpop.xlane.xlu0 %1256
        %v1258 = vrcp.pop %v1254
        %v1259 = vmul.f32 %v1249, %v1258
        %v1260 = vrcp.pop %v1257
        %v1261 = vmul.f32 %v1251, %v1260
        %v1262 = vpack.c.bf16 %v1261, %v1259
        %1263 = vrot.lane.b32.xlu0 %v806, 40
        %v1264 = vpop.permute.xlu0 %1263
        %v1267 = vsel %vm864, %v1262, 0
        %1269 = vmatprep.subr.bf16.mxu0 0
        %1270 = vmatpush1.bf16.msra.mxu0 %v1264
        %1271 = vmatprep.subr.bf16.mxu0 0
        %1272 = vmatpush1.bf16.msra.mxu0 0
        %1273 = vmatprep.subr.bf16.mxu0 0
        %1274 = vmatpush1.bf16.msra.mxu0 0
        %1275 = vmatprep.subr.bf16.mxu0 0
        %1276 = vmatpush1.bf16.msra.mxu0 0
        %1277 = vmatprep.subr.bf16.mxu0 0
        %1278 = vmatpush1.bf16.msra.mxu0 0
        %1279 = vmatprep.subr.bf16.mxu0 0
        %1280 = vmatpush1.bf16.msra.mxu0 0
        %1281 = vmatprep.subr.bf16.mxu0 0
        %1282 = vmatpush1.bf16.msra.mxu0 0
        %1283 = vmatprep.subr.bf16.mxu0 0
        %1284 = vmatpush1.bf16.msra.mxu0 0
        %1285 = vmatprep.subr.bf16.mxu0 0
        %1286 = vmatpush1.bf16.msra.mxu0 0
        %1287 = vmatprep.subr.bf16.mxu0 0
        %1288 = vmatpush1.bf16.msra.mxu0 0
        %1289 = vmatprep.subr.bf16.mxu0 0
        %1290 = vmatpush1.bf16.msra.mxu0 0
        %1291 = vmatprep.subr.bf16.mxu0 0
        %1292 = vmatpush1.bf16.msra.mxu0 0
        %1293 = vmatprep.subr.bf16.mxu0 0
        %1294 = vmatpush1.bf16.msra.mxu0 0
        %1295 = vmatprep.subr.bf16.mxu0 0
        %1296 = vmatpush1.bf16.msra.mxu0 0
        %1297 = vmatprep.subr.bf16.mxu0 0
        %1298 = vmatpush1.bf16.msra.mxu0 0
        %1299 = vmatprep.subr.bf16.mxu0 0
        %1300 = vmatpush1.bf16.msra.mxu0 0
        %1301 = vmatprep.mubr.bf16.mxu0 0
        %1302 = vmatmul.mubr.bf16.gmra.mrb[0].mxu0 %v1267
        %v1303 = vpop.f32.mrb[0].mxu0
        %v1304 = vadd.f32 0.0, %v1303
        %v1305 = vpop.f32.mrb[0].mxu0
        %v1306 = vpop.f32.mrb[0].mxu0
        %v1307 = vadd.f32 0.0, %v1306
        %v1308 = vpop.f32.mrb[0].mxu0
        %1309 = vdwg.mxu0
        %1312 = vrot.lane.b32.xlu0 %v1054, 8
        %v1313 = vpop.permute.xlu0 %1312
        %1314 = vrot.lane.b32.xlu0 %v1057, 8
        %v1315 = vpop.permute.xlu0 %1314
        %1320 = vrot.lane.b32.xlu0 %v1179, 16
        %v1321 = vpop.permute.xlu0 %1320
        %1322 = vrot.lane.b32.xlu0 %v1182, 16
        %v1323 = vpop.permute.xlu0 %1322
        %1328 = vrot.lane.b32.xlu0 %v1304, 24
        %v1329 = vpop.permute.xlu0 %1328
        %1330 = vrot.lane.b32.xlu0 %v1307, 24
        %v1331 = vpop.permute.xlu0 %1330
        %v1334 = vsel %vm812, %v929, %v1313
        %v1335 = vsel %vm812, %v932, %v1315
        %v1336 = vsel %vm864, %v1334, %v1321
        %v1337 = vsel %vm864, %v1335, %v1323
        %vm1338 = vcmask 195584
        %v1339 = vsel %vm1338, %v1336, %v1329
        %v1340 = vsel %vm1338, %v1337, %v1331
        %v1341 = vpack.c.bf16 %v1340, %v1339
        %v1342 = vld [vmem:[%s648] sm:$0xf]
        %v1343 = vld [vmem:[%s648 + $0x4] sm:$0xf]
        %v1344 = vld [vmem:[%s648 + $0x8] sm:$0xf]
        %v1345 = vld [vmem:[%s648 + $0xc] sm:$0xf]
        %v1346 = vld [vmem:[%s651] sm:$0x1]
        %v1348 = vlaneseq
        %v1349 = vshrl.u32 %v1348, 7
        %v1350 = vsub.s32 0, %v1349
        %v1351 = vrot.slane %v1346, %v1350
        %v1357 = vunpack.c.l.b16 %v1342
        %v1358 = vunpack.c.l.b16 %v1343
        %v1359 = vunpack.c.l.b16 %v1344
        %v1360 = vunpack.c.l.b16 %v1345
        %v1361 = vpack.c.b16 %v1358, %v1357
        %v1362 = vpack.c.b16 %v1360, %v1359
        %v1366 = vsel %vm761, %v1341, 0
        %1368 = vmatprep.subr.bf16.mxu0 0
        %1369 = vmatpush1.bf16.msra.mxu0 %v1361
        %1370 = vmatprep.subr.bf16.mxu0 0
        %1371 = vmatpush1.bf16.msra.mxu0 %v1362
        %1372 = vmatprep.subr.bf16.mxu0 0
        %1373 = vmatpush1.bf16.msra.mxu0 0
        %1374 = vmatprep.subr.bf16.mxu0 0
        %1375 = vmatpush1.bf16.msra.mxu0 0
        %1376 = vmatprep.subr.bf16.mxu0 0
        %1377 = vmatpush1.bf16.msra.mxu0 0
        %1378 = vmatprep.subr.bf16.mxu0 0
        %1379 = vmatpush1.bf16.msra.mxu0 0
        %1380 = vmatprep.subr.bf16.mxu0 0
        %1381 = vmatpush1.bf16.msra.mxu0 0
        %1382 = vmatprep.subr.bf16.mxu0 0
        %1383 = vmatpush1.bf16.msra.mxu0 0
        %1384 = vmatprep.subr.bf16.mxu0 0
        %1385 = vmatpush1.bf16.msra.mxu0 0
        %1386 = vmatprep.subr.bf16.mxu0 0
        %1387 = vmatpush1.bf16.msra.mxu0 0
        %1388 = vmatprep.subr.bf16.mxu0 0
        %1389 = vmatpush1.bf16.msra.mxu0 0
        %1390 = vmatprep.subr.bf16.mxu0 0
        %1391 = vmatpush1.bf16.msra.mxu0 0
        %1392 = vmatprep.subr.bf16.mxu0 0
        %1393 = vmatpush1.bf16.msra.mxu0 0
        %1394 = vmatprep.subr.bf16.mxu0 0
        %1395 = vmatpush1.bf16.msra.mxu0 0
        %1396 = vmatprep.subr.bf16.mxu0 0
        %1397 = vmatpush1.bf16.msra.mxu0 0
        %1398 = vmatprep.subr.bf16.mxu0 0
        %1399 = vmatpush1.bf16.msra.mxu0 0
        %1400 = vmatprep.mubr.bf16.mxu0 0
        %1401 = vmatmul.mubr.bf16.gmra.mrb[0].mxu0 %v1366
        %v1402 = vpop.f32.mrb[0].mxu0
        %v1403 = vadd.f32 %v1351, %v1402
        %v1404 = vpop.f32.mrb[0].mxu0
        %v1405 = vpop.f32.mrb[0].mxu0
        %v1406 = vadd.f32 %v1351, %v1405
        %v1407 = vpop.f32.mrb[0].mxu0
        %1408 = vdwg.mxu0
        %v1409 = vadd.f32 %v1403, %v735
        %v1410 = vadd.f32 %v1406, %v736
        %v1411 = vld [vmem:[%s654] sm:$0x1]
        %v1412 = vld [vmem:[%s657] sm:$0x1]
        %v1413 = vsel %vm761, %v1409, 0.0
        %1414 = vadd.xlane.f32.xlu0 %v1413
        %v1415 = vpop.xlane.xlu0 %1414
        %v1416 = vsel %vm761, %v1410, 0.0
        %1417 = vadd.xlane.f32.xlu0 %v1416
        %v1418 = vpop.xlane.xlu0 %1417
        %v1419 = vrcp.pop 32.0
        %v1420 = vmul.f32 %v1415, %v1419
        %v1421 = vmul.f32 %v1418, %v1419
        %v1422 = vsub.f32 %v1409, %v1420
        %v1423 = vsub.f32 %v1410, %v1421
        %v1424 = vmul.f32 %v1422, %v1422
        %v1425 = vmul.f32 %v1423, %v1423
        %v1426 = vsel %vm761, %v1424, 0.0
        %1427 = vadd.xlane.f32.xlu0 %v1426
        %v1428 = vpop.xlane.xlu0 %1427
        %v1429 = vsel %vm761, %v1425, 0.0
        %1430 = vadd.xlane.f32.xlu0 %v1429
        %v1431 = vpop.xlane.xlu0 %1430
        %v1432 = vmul.f32 %v1428, %v1419
        %v1433 = vmul.f32 %v1431, %v1419
        %v1434 = vadd.f32 %v1432, 1e-12
        %v1435 = vadd.f32 %v1433, 1e-12
        %v1436 = vrsqrt.pop %v1434
        %v1437 = vrsqrt.pop %v1435
        %v1438 = vmul.f32 %v1422, %v1436
        %v1439 = vmul.f32 %v1423, %v1437
        %v1441 = vlaneseq
        %v1442 = vshrl.u32 %v1441, 7
        %v1443 = vsub.s32 0, %v1442
        %v1444 = vrot.slane %v1411, %v1443
        %v1446 = vmul.f32 %v1438, %v1444
        %v1447 = vmul.f32 %v1439, %v1444
        %v1449 = vlaneseq
        %v1450 = vshrl.u32 %v1449, 7
        %v1451 = vsub.s32 0, %v1450
        %v1452 = vrot.slane %v1412, %v1451
        %v1454 = vadd.f32 %v1446, %v1452
        %v1455 = vadd.f32 %v1447, %v1452
        %v1456 = vpack.c.bf16 %v1455, %v1454
        %v1457 = vld [vmem:[%s662] sm:$0xf]
        %v1458 = vld [vmem:[%s662 + $0x4] sm:$0xf]
        %v1459 = vld [vmem:[%s662 + $0x8] sm:$0xf]
        %v1460 = vld [vmem:[%s662 + $0xc] sm:$0xf]
        %v1461 = vld [vmem:[%s665] sm:$0x1]
        %v1463 = vlaneseq
        %v1464 = vshrl.u32 %v1463, 7
        %v1465 = vsub.s32 0, %v1464
        %v1466 = vrot.slane %v1461, %v1465
        %v1472 = vunpack.c.l.b16 %v1457
        %v1473 = vunpack.c.l.b16 %v1458
        %v1474 = vunpack.c.l.b16 %v1459
        %v1475 = vunpack.c.l.b16 %v1460
        %v1476 = vpack.c.b16 %v1473, %v1472
        %v1477 = vpack.c.b16 %v1475, %v1474
        %v1481 = vsel %vm761, %v1456, 0
        %1483 = vmatprep.subr.bf16.mxu0 0
        %1484 = vmatpush1.bf16.msra.mxu0 %v1476
        %1485 = vmatprep.subr.bf16.mxu0 0
        %1486 = vmatpush1.bf16.msra.mxu0 %v1477
        %1487 = vmatprep.subr.bf16.mxu0 0
        %1488 = vmatpush1.bf16.msra.mxu0 0
        %1489 = vmatprep.subr.bf16.mxu0 0
        %1490 = vmatpush1.bf16.msra.mxu0 0
        %1491 = vmatprep.subr.bf16.mxu0 0
        %1492 = vmatpush1.bf16.msra.mxu0 0
        %1493 = vmatprep.subr.bf16.mxu0 0
        %1494 = vmatpush1.bf16.msra.mxu0 0
        %1495 = vmatprep.subr.bf16.mxu0 0
        %1496 = vmatpush1.bf16.msra.mxu0 0
        %1497 = vmatprep.subr.bf16.mxu0 0
        %1498 = vmatpush1.bf16.msra.mxu0 0
        %1499 = vmatprep.subr.bf16.mxu0 0
        %1500 = vmatpush1.bf16.msra.mxu0 0
        %1501 = vmatprep.subr.bf16.mxu0 0
        %1502 = vmatpush1.bf16.msra.mxu0 0
        %1503 = vmatprep.subr.bf16.mxu0 0
        %1504 = vmatpush1.bf16.msra.mxu0 0
        %1505 = vmatprep.subr.bf16.mxu0 0
        %1506 = vmatpush1.bf16.msra.mxu0 0
        %1507 = vmatprep.subr.bf16.mxu0 0
        %1508 = vmatpush1.bf16.msra.mxu0 0
        %1509 = vmatprep.subr.bf16.mxu0 0
        %1510 = vmatpush1.bf16.msra.mxu0 0
        %1511 = vmatprep.subr.bf16.mxu0 0
        %1512 = vmatpush1.bf16.msra.mxu0 0
        %1513 = vmatprep.subr.bf16.mxu0 0
        %1514 = vmatpush1.bf16.msra.mxu0 0
        %1515 = vmatprep.mubr.bf16.mxu0 0
        %1516 = vmatmul.mubr.bf16.gmra.mrb[0].mxu0 %v1481
        %v1517 = vpop.f32.mrb[0].mxu0
        %v1518 = vadd.f32 %v1466, %v1517
        %v1519 = vpop.f32.mrb[0].mxu0
        %v1520 = vpop.f32.mrb[0].mxu0
        %v1521 = vadd.f32 %v1466, %v1520
        %v1522 = vpop.f32.mrb[0].mxu0
        %1523 = vdwg.mxu0
        %v1524 = vmul.f32 %v1518, 0.5
        %v1525 = vmul.f32 %v1521, 0.5
        %v1526 = vmul.f32 %v1518, 0.044715
        %v1527 = vmul.f32 %v1521, 0.044715
        %v1528 = vmul.f32 %v1526, %v1518
        %v1529 = vmul.f32 %v1527, %v1521
        %v1530 = vmul.f32 %v1528, %v1518
        %v1531 = vmul.f32 %v1529, %v1521
        %v1532 = vadd.f32 %v1518, %v1530
        %v1533 = vadd.f32 %v1521, %v1531
        %v1534 = vmul.f32 %v1532, 0.7978846
        %v1535 = vmul.f32 %v1533, 0.7978846
        %v1536 = vtanh.pop %v1534
        %v1537 = vtanh.pop %v1535
        %v1538 = vadd.f32 %v1536, 1.0
        %v1539 = vadd.f32 %v1537, 1.0
        %v1540 = vmul.f32 %v1524, %v1538
        %v1541 = vmul.f32 %v1525, %v1539
        %v1542 = vpack.c.bf16 %v1541, %v1540
        %v1543 = vld [vmem:[%s670] sm:$0xf]
        %v1544 = vld [vmem:[%s670 + $0x4] sm:$0xf]
        %v1545 = vld [vmem:[%s670 + $0x8] sm:$0xf]
        %v1546 = vld [vmem:[%s670 + $0xc] sm:$0xf]
        %v1547 = vld [vmem:[%s670 + $0x10] sm:$0xf]
        %v1548 = vld [vmem:[%s670 + $0x14] sm:$0xf]
        %v1549 = vld [vmem:[%s670 + $0x18] sm:$0xf]
        %v1550 = vld [vmem:[%s670 + $0x1c] sm:$0xf]
        %v1551 = vld [vmem:[%s673] sm:$0x1]
        %v1553 = vlaneseq
        %v1554 = vshrl.u32 %v1553, 7
        %v1555 = vsub.s32 0, %v1554
        %v1556 = vrot.slane %v1551, %v1555
        %v1566 = vunpack.c.l.b16 %v1543
        %v1567 = vunpack.c.l.b16 %v1544
        %v1568 = vunpack.c.l.b16 %v1545
        %v1569 = vunpack.c.l.b16 %v1546
        %v1570 = vunpack.c.l.b16 %v1547
        %v1571 = vunpack.c.l.b16 %v1548
        %v1572 = vunpack.c.l.b16 %v1549
        %v1573 = vunpack.c.l.b16 %v1550
        %v1574 = vpack.c.b16 %v1567, %v1566
        %v1575 = vpack.c.b16 %v1569, %v1568
        %v1576 = vpack.c.b16 %v1571, %v1570
        %v1577 = vpack.c.b16 %v1573, %v1572
        %vm1582 = vcmask 523264
        %v1584 = vsel %vm1582, %v1542, 0
        %1586 = vmatprep.subr.bf16.mxu0 0
        %1587 = vmatpush1.bf16.msra.mxu0 %v1574
        %1588 = vmatprep.subr.bf16.mxu0 0
        %1589 = vmatpush1.bf16.msra.mxu0 %v1575
        %1590 = vmatprep.subr.bf16.mxu0 0
        %1591 = vmatpush1.bf16.msra.mxu0 %v1576
        %1592 = vmatprep.subr.bf16.mxu0 0
        %1593 = vmatpush1.bf16.msra.mxu0 %v1577
        %1594 = vmatprep.subr.bf16.mxu0 0
        %1595 = vmatpush1.bf16.msra.mxu0 0
        %1596 = vmatprep.subr.bf16.mxu0 0
        %1597 = vmatpush1.bf16.msra.mxu0 0
        %1598 = vmatprep.subr.bf16.mxu0 0
        %1599 = vmatpush1.bf16.msra.mxu0 0
        %1600 = vmatprep.subr.bf16.mxu0 0
        %1601 = vmatpush1.bf16.msra.mxu0 0
        %1602 = vmatprep.subr.bf16.mxu0 0
        %1603 = vmatpush1.bf16.msra.mxu0 0
        %1604 = vmatprep.subr.bf16.mxu0 0
        %1605 = vmatpush1.bf16.msra.mxu0 0
        %1606 = vmatprep.subr.bf16.mxu0 0
        %1607 = vmatpush1.bf16.msra.mxu0 0
        %1608 = vmatprep.subr.bf16.mxu0 0
        %1609 = vmatpush1.bf16.msra.mxu0 0
        %1610 = vmatprep.subr.bf16.mxu0 0
        %1611 = vmatpush1.bf16.msra.mxu0 0
        %1612 = vmatprep.subr.bf16.mxu0 0
        %1613 = vmatpush1.bf16.msra.mxu0 0
        %1614 = vmatprep.subr.bf16.mxu0 0
        %1615 = vmatpush1.bf16.msra.mxu0 0
        %1616 = vmatprep.subr.bf16.mxu0 0
        %1617 = vmatpush1.bf16.msra.mxu0 0
        %1618 = vmatprep.mubr.bf16.mxu0 0
        %1619 = vmatmul.mubr.bf16.gmra.mrb[0].mxu0 %v1584
        %v1620 = vpop.f32.mrb[0].mxu0
        %v1621 = vadd.f32 %v1556, %v1620
        %v1622 = vpop.f32.mrb[0].mxu0
        %v1623 = vpop.f32.mrb[0].mxu0
        %v1624 = vadd.f32 %v1556, %v1623
        %v1625 = vpop.f32.mrb[0].mxu0
        %1626 = vdwg.mxu0
        %v1627 = vadd.f32 %v1621, %v1454
        %v1628 = vadd.f32 %v1624, %v1455
        %v1629 = vld [vmem:[%s676] sm:$0x1]
        %v1630 = vld [vmem:[%s679] sm:$0x1]
        %v1631 = vsel %vm761, %v1627, 0.0
        %1632 = vadd.xlane.f32.xlu0 %v1631
        %v1633 = vpop.xlane.xlu0 %1632
        %v1634 = vsel %vm761, %v1628, 0.0
        %1635 = vadd.xlane.f32.xlu0 %v1634
        %v1636 = vpop.xlane.xlu0 %1635
        %v1637 = vmul.f32 %v1633, %v1419
        %v1638 = vmul.f32 %v1636, %v1419
        %v1639 = vsub.f32 %v1627, %v1637
        %v1640 = vsub.f32 %v1628, %v1638
        %v1641 = vmul.f32 %v1639, %v1639
        %v1642 = vmul.f32 %v1640, %v1640
        %v1643 = vsel %vm761, %v1641, 0.0
        %1644 = vadd.xlane.f32.xlu0 %v1643
        %v1645 = vpop.xlane.xlu0 %1644
        %v1646 = vsel %vm761, %v1642, 0.0
        %1647 = vadd.xlane.f32.xlu0 %v1646
        %v1648 = vpop.xlane.xlu0 %1647
        %v1649 = vmul.f32 %v1645, %v1419
        %v1650 = vmul.f32 %v1648, %v1419
        %v1651 = vadd.f32 %v1649, 1e-12
        %v1652 = vadd.f32 %v1650, 1e-12
        %v1653 = vrsqrt.pop %v1651
        %v1654 = vrsqrt.pop %v1652
        %v1655 = vmul.f32 %v1639, %v1653
        %v1656 = vmul.f32 %v1640, %v1654
        %v1658 = vlaneseq
        %v1659 = vshrl.u32 %v1658, 7
        %v1660 = vsub.s32 0, %v1659
        %v1661 = vrot.slane %v1629, %v1660
        %v1663 = vmul.f32 %v1655, %v1661
        %v1664 = vmul.f32 %v1656, %v1661
        %v1666 = vlaneseq
        %v1667 = vshrl.u32 %v1666, 7
        %v1668 = vsub.s32 0, %v1667
        %v1669 = vrot.slane %v1630, %v1668
        %v1671 = vadd.f32 %v1663, %v1669
        %v1672 = vadd.f32 %v1664, %v1669
        %1673 = vst.msk [vmem:[#allocation2] sm:$0xff] %vm761, %v1671
        %1674 = vst.msk [vmem:[#allocation2 + $0x8] sm:$0xff] %vm761, %v1672
        %p1675 = scmp.eq.s32.totalorder %s28, 1
        // Predicated region
        $region89: #{bert_forward.1} parent=83 // pred_check
          %p1676 = pneg %p1675
        $region90: #{bert_forward.1} parent=83 // pred_check_branch
          %1678 = sbr.rel (%p1676) target = $region92
        $region91: #{bert_forward.1} parent=83 // pred_region
          %1679 = vst.msk [vmem:[#allocation3] sm:$0xff] %vm761, %v1671
          %1680 = vst.msk [vmem:[#allocation3 + $0x8] sm:$0xff] %vm761, %v1672
        $region92: #{bert_forward.1} parent=83 // pred_fallthru
          _
        // Predicated region
        $region93: #{bert_forward.1} parent=83 // pred_check
          %p1681 = pneg %p437
        $region94: #{bert_forward.1} parent=83 // pred_check_branch
          %1683 = sbr.rel (%p1681) target = $region96
        $region95: #{bert_forward.1} parent=83 // pred_region
          %s1685 = ssub.s32 256, 256
          %1686 = vsyncadd [#allocation4], %s1685
          %s1687 = sshll.u32 [#allocation3], 4
          %s1688 = int_to_ptr.vmem [resolvable:$true] %s1687
          %1693 = dma.vmem_to_hbm [thread:$0]  %s1688, 256, %s16, [#allocation4], 128, 128, 8
        $region96: #{bert_forward.1} parent=83 // pred_fallthru
          _
        // Predicated region
        $region97: #{bert_forward.1} parent=83 // pred_check
          %p1694 = pneg %p437
        $region98: #{bert_forward.1} parent=83 // pred_check_branch
          %1696 = sbr.rel (%p1694) target = $region100
        $region99: #{bert_forward.1} parent=83 // pred_region
          %1697 = dma.done [#allocation4], 256
        $region100: #{bert_forward.1} parent=83 // pred_fallthru
          _
      $region84: #{bert_forward.1} parent=5 // pred_fallthru
        _
      %p1698 = scmp.le.s32.totalorder 2, %s23
      // Predicated region
      $region101: #{bert_forward.1} parent=5 // pred_check
        %p1699 = pneg %p1698
      $region102: #{bert_forward.1} parent=5 // pred_check_branch
        %1701 = sbr.rel (%p1699) target = $region104
      $region103: #{bert_forward.1} parent=5 // pred_region
        %s1702 = ssub.s32 %s23, 2
      $region104: #{bert_forward.1} parent=5 // pred_fallthru
        _
    $region6: #{bert_forward.1} parent=1 // loop_footer
      %s27 = sadd.s32 1, %s23
    $region7: #{bert_forward.1} parent=1 // loop_footer_branch
      %22 = sbr.rel target = $region3
    $region8: #{bert_forward.1} parent=1 // loop_exit
      _
    %1703 = vsyncpa [#allocation4], 1
    %s1704 = scalar_lea.sflag [#allocation4], 1
    %1705 = vsyncpa %s1704, 1

</llo_original>
